<compile_context>
chip_gen: v5e
topology: v5e:2x2
jax: 0.10.0
libtpu: 0.0.40
codegen_flags: <defaults>
</compile_context>

<pallas_src>
import functools

import numpy as np
import jax
import jax.numpy as jnp
from jax.experimental import pallas as pl
from jax.experimental.pallas import tpu as pltpu


# ----------------------------------------------------------------------------
# Host-side graph support (calculate_scaled_laplacian, lambda_max=None,
# undirected=True; scipy.sparse replaced by dense numpy).
# ----------------------------------------------------------------------------
def scaled_laplacian(adj):
    adj = np.maximum(adj, adj.T)
    d = adj.sum(axis=1)
    with np.errstate(divide="ignore"):
        d_inv_sqrt = np.power(d, -0.5)
    d_inv_sqrt[np.isinf(d_inv_sqrt)] = 0.0
    n = adj.shape[0]
    # L = I - D^-1/2 A^T D^-1/2  (A symmetric here)
    lap = np.eye(n) - (d_inv_sqrt[:, None] * adj.T * d_inv_sqrt[None, :])
    lambda_max = float(np.linalg.eigvalsh(lap).max())
    return ((2.0 / lambda_max) * lap - np.eye(n)).astype(np.float32)


# ----------------------------------------------------------------------------
# Parameter init.  Weights are generated at the original PyTorch GCONV layout
# (shape (C*M, O), row index = c*M + m, xavier-normal) and then re-packed into
# the concat-free layout the kernel consumes:
#   wall : (3*L*M, U, 3U) f32, flat index = (part*L + layer)*M + m
#            part 0: x-side   [Wg_x | Wc_x]  (full 3U lanes; rows >= Din zeroed)
#            part 1: gate-h   Wg_h           (lanes [0, 2U), rest zero)
#            part 2: cand-h   Wc_h           (lanes [2U, 3U), rest zero)
#   bias : (L, 1, 3U) f32   [bg (bias_start=1.0) | bc (bias_start=0.0)]
# The original-layout weights are also returned for the pure-JAX reference.
# ----------------------------------------------------------------------------
def _xavier_normal(key, shape):
    std = np.sqrt(2.0 / (shape[0] + shape[1]))
    return std * jax.random.normal(key, shape, dtype=jnp.float32)


def init_encoder_params(key, input_dim, units, max_diffusion_step, num_layers):
    assert input_dim <= units, "layer-0 input is zero-padded up to `units` lanes"
    M = max_diffusion_step + 1          # single (laplacian) support
    U = units
    wall = np.zeros((3, num_layers, M, U, 3 * U), np.float32)
    bias = np.zeros((num_layers, 1, 3 * U), np.float32)
    torch_params = []
    for layer in range(num_layers):
        din = input_dim if layer == 0 else units
        C = din + U
        key, kg, kc = jax.random.split(key, 3)
        Wg = np.asarray(_xavier_normal(kg, (C * M, 2 * U)))   # gate GCONV
        Wc = np.asarray(_xavier_normal(kc, (C * M, U)))       # candidate GCONV
        bg = np.ones((2 * U,), np.float32)                    # bias_start = 1.0
        bc = np.zeros((U,), np.float32)                       # bias_start = 0.0
        torch_params.append(dict(Wg=jnp.asarray(Wg), bg=jnp.asarray(bg),
                                 Wc=jnp.asarray(Wc), bc=jnp.asarray(bc)))
        # PyTorch rows are ordered c*M + m (feature-major, Chebyshev-minor).
        Wg_m = Wg.reshape(C, M, 2 * U).transpose(1, 0, 2)     # (M, C, 2U)
        Wc_m = Wc.reshape(C, M, U).transpose(1, 0, 2)         # (M, C, U)
        wall[0, layer, :, :din, :2 * U] = Wg_m[:, :din, :]    # x-side, gate cols
        wall[0, layer, :, :din, 2 * U:] = Wc_m[:, :din, :]    # x-side, cand cols
        wall[1, layer, :, :, :2 * U] = Wg_m[:, din:, :]       # h-side, gate
        wall[2, layer, :, :, 2 * U:] = Wc_m[:, din:, :]       # h-side, candidate
        bias[layer, 0, :2 * U] = 1.0
        bias[layer, 0, 2 * U:] = 0.0
    wall = wall.reshape(3 * num_layers * M, U, 3 * U)
    return jnp.asarray(wall), jnp.asarray(bias), torch_params


# ----------------------------------------------------------------------------
# Fused L-layer DCGRU step kernel (single invocation, whole batch in sublanes).
# ----------------------------------------------------------------------------
def _encoder_kernel(K, L, U, s_ref, x_ref, h_ref, w_ref, b_ref, out_ref):
    """
    s_ref  : (BN, BN)       f32  block-diagonal scaled-Laplacian support
    x_ref  : (BN, U)        f32  layer-0 input, zero-padded from Din to U lanes
    h_ref  : (L, BN, U)     f32  previous hidden states (aliased to the output)
    w_ref  : (3*L*M, U, 3U) f32  packed GCONV weights (see init_encoder_params)
    b_ref  : (L, 1, 3U)     f32  packed GCONV biases  [gate(2U) | cand(U)]
    out_ref: (L, BN, U)     f32  new hidden states
    """
    M = K + 1
    BN = x_ref.shape[0]
    S = s_ref[...]
    x = x_ref[...]

    def diffuse(t0):
        # Chebyshev diffusion T_0..T_K of t0 under the block-diagonal support.
        feats = [t0]
        if K > 0:
            t1 = jnp.dot(S, t0, preferred_element_type=jnp.float32)
            feats.append(t1)
            for _ in range(2, K + 1):
                t2 = 2.0 * jnp.dot(S, t1, preferred_element_type=jnp.float32) - t0
                feats.append(t2)
                t0, t1 = t1, t2
        return feats

    def w(part, layer, m):                       # static ref index -> (U, 3U)
        return w_ref[(part * L + layer) * M + m]

    for layer in range(L):
        h = h_ref[layer]                         # (BN, U)
        xf = diffuse(x)                          # shared between gate & candidate
        hf = diffuse(h)
        # Gate (2U lanes) and candidate-x (U lanes) pre-activations in ONE
        # 3U-wide accumulator; biases folded into the initial value.
        pre = jnp.broadcast_to(b_ref[layer], (BN, 3 * U))
        for m in range(M):
            pre = pre + jnp.dot(xf[m], w(0, layer, m),
                                preferred_element_type=jnp.float32)
            pre = pre + jnp.dot(hf[m], w(1, layer, m),
                                preferred_element_type=jnp.float32)
        ru = jax.nn.sigmoid(pre[:, :2 * U])
        r, u = ru[:, :U], ru[:, U:]
        # Candidate: only the h-side has to be re-diffused (with r*h).
        rhf = diffuse(r * h)
        cacc = pre                               # cand-h weights live in lanes [2U:3U)
        for m in range(M):
            cacc = cacc + jnp.dot(rhf[m], w(2, layer, m),
                                  preferred_element_type=jnp.float32)
        c = jnp.tanh(cacc[:, 2 * U:])
        h_new = u * h + (1.0 - u) * c
        out_ref[layer] = h_new
        x = h_new                                # feed next layer


# ----------------------------------------------------------------------------
# EncoderModel.forward equivalent.
# ----------------------------------------------------------------------------
def encoder_forward(inputs, hidden_state, *, support_blockdiag, wall, bias,
                    num_nodes, rnn_units, max_diffusion_step, input_dim,
                    num_layers):
    """inputs: (B, N*input_dim); hidden_state: (L, B, N*rnn_units) or None.
    Returns (output (B, N*U), hidden_states (L, B, N*U))."""
    B = inputs.shape[0]
    N, U, L = num_nodes, rnn_units, num_layers
    BN = B * N
    if hidden_state is None:
        hidden_state = jnp.zeros((L, B, N * U), jnp.float32)

    # Pack the batch into the sublane axis: one kernel call for all B elements.
    x = inputs.reshape(BN, input_dim).astype(jnp.float32)
    x = jnp.pad(x, ((0, 0), (0, U - input_dim)))      # zero-pad lanes to U
    h = hidden_state.reshape(L, BN, U).astype(jnp.float32)

    kernel = functools.partial(_encoder_kernel, max_diffusion_step, L, U)
    vmem_spec = pl.BlockSpec(memory_space=pltpu.MemorySpace.VMEM)

    new_h = pl.pallas_call(
        kernel,
        out_shape=jax.ShapeDtypeStruct((L, BN, U), jnp.float32),
        in_specs=[vmem_spec] * 5,
        out_specs=vmem_spec,
        input_output_aliases={2: 0},   # previous hidden buffer fully overwritten
    )(support_blockdiag, x, h, wall, bias)

    new_h = new_h.reshape(L, B, N * U)   # free row-major reshape, outside kernel
    return new_h[-1], new_h


# ----------------------------------------------------------------------------
# Pure-JAX port of the PyTorch EncoderModel math (original weight layout) used
# only as a correctness cross-check for the repacked kernel.
# ----------------------------------------------------------------------------
def _reference_forward(inputs, hidden_state, support, params, num_nodes, units,
                       max_diffusion_step):
    B = inputs.shape[0]
    N, U, K = num_nodes, units, max_diffusion_step
    M = K + 1

    def gconv(x_in, state, W, b, out_dim):
        x_in = x_in.reshape(B, N, -1)
        state = state.reshape(B, N, -1)
        cat = jnp.concatenate([x_in, state], axis=2)          # (B, N, C)
        C = cat.shape[2]
        x0 = jnp.transpose(cat, (1, 2, 0)).reshape(N, C * B)
        xs = [x0]
        if K > 0:
            x1 = support @ x0
            xs.append(x1)
            for _ in range(2, K + 1):
                x2 = 2.0 * (support @ x1) - x0
                xs.append(x2)
                x0, x1 = x1, x2
        xk = jnp.stack(xs, 0).reshape(M, N, C, B)
        xk = jnp.transpose(xk, (3, 1, 2, 0)).reshape(B * N, C * M)
        return (xk @ W + b).reshape(B, N * out_dim)

    out = inputs
    new_states = []
    for layer, p in enumerate(params):
        hx = hidden_state[layer]
        value = jax.nn.sigmoid(gconv(out, hx, p["Wg"], p["bg"], 2 * U))
        value = value.reshape(B, N, 2 * U)
        r = value[..., :U].reshape(B, N * U)
        u = value[..., U:].reshape(B, N * U)
        c = jnp.tanh(gconv(out, r * hx, p["Wc"], p["bc"], U))
        new_h = u * hx + (1.0 - u) * c
        new_states.append(new_h)
        out = new_h
    return out, jnp.stack(new_states)


# ----------------------------------------------------------------------------
if __name__ == "__main__":
    B, N, U, L, K = 2, 16, 32, 2, 2   # batch, num_nodes, rnn_units, layers, K
    INPUT_DIM = 1                     # EncoderModel feature_dim default

    key = jax.random.PRNGKey(0)
    k_adj, k_x, k_p = jax.random.split(key, 3)

    # Deterministic random adjacency with self-loops.
    adj = np.asarray(jax.random.uniform(k_adj, (N, N), dtype=jnp.float32))
    adj = (adj > 0.5).astype(np.float64)
    np.fill_diagonal(adj, 1.0)
    support = scaled_laplacian(adj)                    # dense (N, N) f32
    # TODO(synk): PyTorch keeps the support as a torch.sparse COO tensor; here a
    # dense block-diagonal (B*N, B*N) support is used (fine for small B*N; large
    # graphs would need a node-tiled grid instead of the block-diagonal trick).
    support_blockdiag = jnp.asarray(np.kron(np.eye(B, dtype=np.float32), support))

    wall, bias, torch_params = init_encoder_params(k_p, INPUT_DIM, U, K, L)

    inputs = jax.random.normal(k_x, (B, N * INPUT_DIM), dtype=jnp.float32)
    hidden_state = jnp.zeros((L, B, N * U), dtype=jnp.float32)   # None -> zeros

    fwd = jax.jit(functools.partial(
        encoder_forward,
        support_blockdiag=support_blockdiag, wall=wall, bias=bias,
        num_nodes=N, rnn_units=U, max_diffusion_step=K,
        input_dim=INPUT_DIM, num_layers=L))

    output, hidden_states = fwd(inputs, hidden_state)
    jax.block_until_ready((output, hidden_states))

    assert output.shape == (B, N * U)
    assert hidden_states.shape == (L, B, N * U)
    assert bool(jnp.all(jnp.isfinite(output)))
    assert bool(jnp.all(jnp.isfinite(hidden_states)))

    # Cross-check the repacked-weight kernel against the PyTorch-layout math
    # (loose tolerance: MXU matmul precision differs from the XLA reference).
    ref_out, ref_h = _reference_forward(inputs, hidden_state,
                                        jnp.asarray(support), torch_params,
                                        N, U, K)
    np.testing.assert_allclose(np.asarray(output), np.asarray(ref_out),
                               rtol=5e-2, atol=5e-2)
    np.testing.assert_allclose(np.asarray(hidden_states), np.asarray(ref_h),
                               rtol=5e-2, atol=5e-2)

    print("KERNEL_OK")
</pallas_src>

<mosaic_0001>
module attributes {stable_mosaic.version = 11 : i64} {
  func.func @_encoder_kernel(%arg0: memref<32x32xf32, #tpu.memory_space<vmem>>, %arg1: memref<32x32xf32, #tpu.memory_space<vmem>>, %arg2: memref<2x32x32xf32, #tpu.memory_space<vmem>>, %arg3: memref<18x32x96xf32, #tpu.memory_space<vmem>>, %arg4: memref<2x1x96xf32, #tpu.memory_space<vmem>>, %arg5: memref<2x32x32xf32, #tpu.memory_space<vmem>>) attributes {dimension_semantics = [], scalar_prefetch = 0 : i64, scratch_operands = 0 : i64, tpu.core_type = #tpu.core_type<tc>} {
    %c0 = arith.constant 0 : index
    %c0_0 = arith.constant 0 : index
    %0 = vector.load %arg0[%c0, %c0_0] : memref<32x32xf32, #tpu.memory_space<vmem>>, vector<32x32xf32>
    %c0_1 = arith.constant 0 : index
    %c0_2 = arith.constant 0 : index
    %1 = vector.load %arg1[%c0_1, %c0_2] : memref<32x32xf32, #tpu.memory_space<vmem>>, vector<32x32xf32>
    %c0_3 = arith.constant 0 : index
    %c0_4 = arith.constant 0 : index
    %c0_5 = arith.constant 0 : index
    %2 = vector.load %arg2[%c0_3, %c0_4, %c0_5] : memref<2x32x32xf32, #tpu.memory_space<vmem>>, vector<1x32x32xf32>
    %3 = vector.shape_cast %2 : vector<1x32x32xf32> to vector<32x32xf32>
    %cst = arith.constant dense<0.000000e+00> : vector<32x32xf32>
    %4 = tpu.matmul %0, %1, %cst {dimension_numbers = #tpu.dot_dimension_numbers<[1], [0], [0], [1], [0, 0, 1, 1], [], []>} : vector<32x32xf32>, vector<32x32xf32>, vector<32x32xf32> -> vector<32x32xf32>
    %cst_6 = arith.constant dense<0.000000e+00> : vector<32x32xf32>
    %5 = tpu.matmul %0, %4, %cst_6 {dimension_numbers = #tpu.dot_dimension_numbers<[1], [0], [0], [1], [0, 0, 1, 1], [], []>} : vector<32x32xf32>, vector<32x32xf32>, vector<32x32xf32> -> vector<32x32xf32>
    %cst_7 = arith.constant 2.000000e+00 : f32
    %6 = vector.broadcast %cst_7 : f32 to vector<32x32xf32>
    %7 = arith.mulf %6, %5 : vector<32x32xf32>
    %8 = arith.subf %7, %1 : vector<32x32xf32>
    %cst_8 = arith.constant dense<0.000000e+00> : vector<32x32xf32>
    %9 = tpu.matmul %0, %3, %cst_8 {dimension_numbers = #tpu.dot_dimension_numbers<[1], [0], [0], [1], [0, 0, 1, 1], [], []>} : vector<32x32xf32>, vector<32x32xf32>, vector<32x32xf32> -> vector<32x32xf32>
    %cst_9 = arith.constant dense<0.000000e+00> : vector<32x32xf32>
    %10 = tpu.matmul %0, %9, %cst_9 {dimension_numbers = #tpu.dot_dimension_numbers<[1], [0], [0], [1], [0, 0, 1, 1], [], []>} : vector<32x32xf32>, vector<32x32xf32>, vector<32x32xf32> -> vector<32x32xf32>
    %cst_10 = arith.constant 2.000000e+00 : f32
    %11 = vector.broadcast %cst_10 : f32 to vector<32x32xf32>
    %12 = arith.mulf %11, %10 : vector<32x32xf32>
    %13 = arith.subf %12, %3 : vector<32x32xf32>
    %c0_11 = arith.constant 0 : index
    %c0_12 = arith.constant 0 : index
    %c0_13 = arith.constant 0 : index
    %14 = vector.load %arg4[%c0_11, %c0_12, %c0_13] : memref<2x1x96xf32, #tpu.memory_space<vmem>>, vector<1x1x96xf32>
    %15 = vector.shape_cast %14 : vector<1x1x96xf32> to vector<1x96xf32>
    %16 = vector.shape_cast %15 : vector<1x96xf32> to vector<1x96xf32>
    %17 = vector.broadcast %16 : vector<1x96xf32> to vector<32x96xf32>
    %c0_14 = arith.constant 0 : index
    %c0_15 = arith.constant 0 : index
    %c0_16 = arith.constant 0 : index
    %18 = vector.load %arg3[%c0_14, %c0_15, %c0_16] : memref<18x32x96xf32, #tpu.memory_space<vmem>>, vector<1x32x96xf32>
    %19 = vector.shape_cast %18 : vector<1x32x96xf32> to vector<32x96xf32>
    %cst_17 = arith.constant dense<0.000000e+00> : vector<32x96xf32>
    %20 = tpu.matmul %1, %19, %cst_17 {dimension_numbers = #tpu.dot_dimension_numbers<[1], [0], [0], [1], [0, 0, 1, 1], [], []>} : vector<32x32xf32>, vector<32x96xf32>, vector<32x96xf32> -> vector<32x96xf32>
    %21 = arith.addf %17, %20 : vector<32x96xf32>
    %c6 = arith.constant 6 : index
    %c0_18 = arith.constant 0 : index
    %c0_19 = arith.constant 0 : index
    %22 = vector.load %arg3[%c6, %c0_18, %c0_19] : memref<18x32x96xf32, #tpu.memory_space<vmem>>, vector<1x32x96xf32>
    %23 = vector.shape_cast %22 : vector<1x32x96xf32> to vector<32x96xf32>
    %cst_20 = arith.constant dense<0.000000e+00> : vector<32x96xf32>
    %24 = tpu.matmul %3, %23, %cst_20 {dimension_numbers = #tpu.dot_dimension_numbers<[1], [0], [0], [1], [0, 0, 1, 1], [], []>} : vector<32x32xf32>, vector<32x96xf32>, vector<32x96xf32> -> vector<32x96xf32>
    %25 = arith.addf %21, %24 : vector<32x96xf32>
    %c1 = arith.constant 1 : index
    %c0_21 = arith.constant 0 : index
    %c0_22 = arith.constant 0 : index
    %26 = vector.load %arg3[%c1, %c0_21, %c0_22] : memref<18x32x96xf32, #tpu.memory_space<vmem>>, vector<1x32x96xf32>
    %27 = vector.shape_cast %26 : vector<1x32x96xf32> to vector<32x96xf32>
    %cst_23 = arith.constant dense<0.000000e+00> : vector<32x96xf32>
    %28 = tpu.matmul %4, %27, %cst_23 {dimension_numbers = #tpu.dot_dimension_numbers<[1], [0], [0], [1], [0, 0, 1, 1], [], []>} : vector<32x32xf32>, vector<32x96xf32>, vector<32x96xf32> -> vector<32x96xf32>
    %29 = arith.addf %25, %28 : vector<32x96xf32>
    %c7 = arith.constant 7 : index
    %c0_24 = arith.constant 0 : index
    %c0_25 = arith.constant 0 : index
    %30 = vector.load %arg3[%c7, %c0_24, %c0_25] : memref<18x32x96xf32, #tpu.memory_space<vmem>>, vector<1x32x96xf32>
    %31 = vector.shape_cast %30 : vector<1x32x96xf32> to vector<32x96xf32>
    %cst_26 = arith.constant dense<0.000000e+00> : vector<32x96xf32>
    %32 = tpu.matmul %9, %31, %cst_26 {dimension_numbers = #tpu.dot_dimension_numbers<[1], [0], [0], [1], [0, 0, 1, 1], [], []>} : vector<32x32xf32>, vector<32x96xf32>, vector<32x96xf32> -> vector<32x96xf32>
    %33 = arith.addf %29, %32 : vector<32x96xf32>
    %c2 = arith.constant 2 : index
    %c0_27 = arith.constant 0 : index
    %c0_28 = arith.constant 0 : index
    %34 = vector.load %arg3[%c2, %c0_27, %c0_28] : memref<18x32x96xf32, #tpu.memory_space<vmem>>, vector<1x32x96xf32>
    %35 = vector.shape_cast %34 : vector<1x32x96xf32> to vector<32x96xf32>
    %cst_29 = arith.constant dense<0.000000e+00> : vector<32x96xf32>
    %36 = tpu.matmul %8, %35, %cst_29 {dimension_numbers = #tpu.dot_dimension_numbers<[1], [0], [0], [1], [0, 0, 1, 1], [], []>} : vector<32x32xf32>, vector<32x96xf32>, vector<32x96xf32> -> vector<32x96xf32>
    %37 = arith.addf %33, %36 : vector<32x96xf32>
    %c8 = arith.constant 8 : index
    %c0_30 = arith.constant 0 : index
    %c0_31 = arith.constant 0 : index
    %38 = vector.load %arg3[%c8, %c0_30, %c0_31] : memref<18x32x96xf32, #tpu.memory_space<vmem>>, vector<1x32x96xf32>
    %39 = vector.shape_cast %38 : vector<1x32x96xf32> to vector<32x96xf32>
    %cst_32 = arith.constant dense<0.000000e+00> : vector<32x96xf32>
    %40 = tpu.matmul %13, %39, %cst_32 {dimension_numbers = #tpu.dot_dimension_numbers<[1], [0], [0], [1], [0, 0, 1, 1], [], []>} : vector<32x32xf32>, vector<32x96xf32>, vector<32x96xf32> -> vector<32x96xf32>
    %41 = arith.addf %37, %40 : vector<32x96xf32>
    %42 = vector.extract_strided_slice %41 {offsets = [0, 0], sizes = [32, 64], strides = [1, 1]} : vector<32x96xf32> to vector<32x64xf32>
    %43 = arith.negf %42 : vector<32x64xf32>
    %44 = math.exp %43 : vector<32x64xf32>
    %cst_33 = arith.constant 1.000000e+00 : f32
    %45 = vector.broadcast %cst_33 : f32 to vector<32x64xf32>
    %46 = arith.addf %45, %44 : vector<32x64xf32>
    %47 = arith.divf %45, %46 : vector<32x64xf32>
    %48 = vector.extract_strided_slice %47 {offsets = [0, 0], sizes = [32, 32], strides = [1, 1]} : vector<32x64xf32> to vector<32x32xf32>
    %49 = vector.extract_strided_slice %47 {offsets = [0, 32], sizes = [32, 32], strides = [1, 1]} : vector<32x64xf32> to vector<32x32xf32>
    %50 = arith.mulf %48, %3 : vector<32x32xf32>
    %cst_34 = arith.constant dense<0.000000e+00> : vector<32x32xf32>
    %51 = tpu.matmul %0, %50, %cst_34 {dimension_numbers = #tpu.dot_dimension_numbers<[1], [0], [0], [1], [0, 0, 1, 1], [], []>} : vector<32x32xf32>, vector<32x32xf32>, vector<32x32xf32> -> vector<32x32xf32>
    %cst_35 = arith.constant dense<0.000000e+00> : vector<32x32xf32>
    %52 = tpu.matmul %0, %51, %cst_35 {dimension_numbers = #tpu.dot_dimension_numbers<[1], [0], [0], [1], [0, 0, 1, 1], [], []>} : vector<32x32xf32>, vector<32x32xf32>, vector<32x32xf32> -> vector<32x32xf32>
    %cst_36 = arith.constant 2.000000e+00 : f32
    %53 = vector.broadcast %cst_36 : f32 to vector<32x32xf32>
    %54 = arith.mulf %53, %52 : vector<32x32xf32>
    %55 = arith.subf %54, %50 : vector<32x32xf32>
    %c12 = arith.constant 12 : index
    %c0_37 = arith.constant 0 : index
    %c0_38 = arith.constant 0 : index
    %56 = vector.load %arg3[%c12, %c0_37, %c0_38] : memref<18x32x96xf32, #tpu.memory_space<vmem>>, vector<1x32x96xf32>
    %57 = vector.shape_cast %56 : vector<1x32x96xf32> to vector<32x96xf32>
    %cst_39 = arith.constant dense<0.000000e+00> : vector<32x96xf32>
    %58 = tpu.matmul %50, %57, %cst_39 {dimension_numbers = #tpu.dot_dimension_numbers<[1], [0], [0], [1], [0, 0, 1, 1], [], []>} : vector<32x32xf32>, vector<32x96xf32>, vector<32x96xf32> -> vector<32x96xf32>
    %59 = arith.addf %41, %58 : vector<32x96xf32>
    %c13 = arith.constant 13 : index
    %c0_40 = arith.constant 0 : index
    %c0_41 = arith.constant 0 : index
    %60 = vector.load %arg3[%c13, %c0_40, %c0_41] : memref<18x32x96xf32, #tpu.memory_space<vmem>>, vector<1x32x96xf32>
    %61 = vector.shape_cast %60 : vector<1x32x96xf32> to vector<32x96xf32>
    %cst_42 = arith.constant dense<0.000000e+00> : vector<32x96xf32>
    %62 = tpu.matmul %51, %61, %cst_42 {dimension_numbers = #tpu.dot_dimension_numbers<[1], [0], [0], [1], [0, 0, 1, 1], [], []>} : vector<32x32xf32>, vector<32x96xf32>, vector<32x96xf32> -> vector<32x96xf32>
    %63 = arith.addf %59, %62 : vector<32x96xf32>
    %c14 = arith.constant 14 : index
    %c0_43 = arith.constant 0 : index
    %c0_44 = arith.constant 0 : index
    %64 = vector.load %arg3[%c14, %c0_43, %c0_44] : memref<18x32x96xf32, #tpu.memory_space<vmem>>, vector<1x32x96xf32>
    %65 = vector.shape_cast %64 : vector<1x32x96xf32> to vector<32x96xf32>
    %cst_45 = arith.constant dense<0.000000e+00> : vector<32x96xf32>
    %66 = tpu.matmul %55, %65, %cst_45 {dimension_numbers = #tpu.dot_dimension_numbers<[1], [0], [0], [1], [0, 0, 1, 1], [], []>} : vector<32x32xf32>, vector<32x96xf32>, vector<32x96xf32> -> vector<32x96xf32>
    %67 = arith.addf %63, %66 : vector<32x96xf32>
    %68 = vector.extract_strided_slice %67 {offsets = [0, 64], sizes = [32, 32], strides = [1, 1]} : vector<32x96xf32> to vector<32x32xf32>
    %69 = math.tanh %68 : vector<32x32xf32>
    %70 = arith.mulf %49, %3 : vector<32x32xf32>
    %cst_46 = arith.constant 1.000000e+00 : f32
    %71 = vector.broadcast %cst_46 : f32 to vector<32x32xf32>
    %72 = arith.subf %71, %49 : vector<32x32xf32>
    %73 = arith.mulf %72, %69 : vector<32x32xf32>
    %74 = arith.addf %70, %73 : vector<32x32xf32>
    %c0_47 = arith.constant 0 : index
    %c0_48 = arith.constant 0 : index
    %c0_49 = arith.constant 0 : index
    %75 = vector.load %arg5[%c0_47, %c0_48, %c0_49] : memref<2x32x32xf32, #tpu.memory_space<vmem>>, vector<1x32x32xf32>
    %76 = vector.shape_cast %75 : vector<1x32x32xf32> to vector<32x32xf32>
    %77 = vector.shape_cast %74 : vector<32x32xf32> to vector<1x32x32xf32>
    tpu.vector_store %arg5[%c0_47, %c0_48, %c0_49], %77 {strides = array<i32>} : memref<2x32x32xf32, #tpu.memory_space<vmem>>, vector<1x32x32xf32>,
    %c1_50 = arith.constant 1 : index
    %c0_51 = arith.constant 0 : index
    %c0_52 = arith.constant 0 : index
    %78 = vector.load %arg2[%c1_50, %c0_51, %c0_52] : memref<2x32x32xf32, #tpu.memory_space<vmem>>, vector<1x32x32xf32>
    %79 = vector.shape_cast %78 : vector<1x32x32xf32> to vector<32x32xf32>
    %cst_53 = arith.constant dense<0.000000e+00> : vector<32x32xf32>
    %80 = tpu.matmul %0, %74, %cst_53 {dimension_numbers = #tpu.dot_dimension_numbers<[1], [0], [0], [1], [0, 0, 1, 1], [], []>} : vector<32x32xf32>, vector<32x32xf32>, vector<32x32xf32> -> vector<32x32xf32>
    %cst_54 = arith.constant dense<0.000000e+00> : vector<32x32xf32>
    %81 = tpu.matmul %0, %80, %cst_54 {dimension_numbers = #tpu.dot_dimension_numbers<[1], [0], [0], [1], [0, 0, 1, 1], [], []>} : vector<32x32xf32>, vector<32x32xf32>, vector<32x32xf32> -> vector<32x32xf32>
    %cst_55 = arith.constant 2.000000e+00 : f32
    %82 = vector.broadcast %cst_55 : f32 to vector<32x32xf32>
    %83 = arith.mulf %82, %81 : vector<32x32xf32>
    %84 = arith.subf %83, %74 : vector<32x32xf32>
    %cst_56 = arith.constant dense<0.000000e+00> : vector<32x32xf32>
    %85 = tpu.matmul %0, %79, %cst_56 {dimension_numbers = #tpu.dot_dimension_numbers<[1], [0], [0], [1], [0, 0, 1, 1], [], []>} : vector<32x32xf32>, vector<32x32xf32>, vector<32x32xf32> -> vector<32x32xf32>
    %cst_57 = arith.constant dense<0.000000e+00> : vector<32x32xf32>
    %86 = tpu.matmul %0, %85, %cst_57 {dimension_numbers = #tpu.dot_dimension_numbers<[1], [0], [0], [1], [0, 0, 1, 1], [], []>} : vector<32x32xf32>, vector<32x32xf32>, vector<32x32xf32> -> vector<32x32xf32>
    %cst_58 = arith.constant 2.000000e+00 : f32
    %87 = vector.broadcast %cst_58 : f32 to vector<32x32xf32>
    %88 = arith.mulf %87, %86 : vector<32x32xf32>
    %89 = arith.subf %88, %79 : vector<32x32xf32>
    %c1_59 = arith.constant 1 : index
    %c0_60 = arith.constant 0 : index
    %c0_61 = arith.constant 0 : index
    %90 = vector.load %arg4[%c1_59, %c0_60, %c0_61] : memref<2x1x96xf32, #tpu.memory_space<vmem>>, vector<1x1x96xf32>
    %91 = vector.shape_cast %90 : vector<1x1x96xf32> to vector<1x96xf32>
    %92 = vector.shape_cast %91 : vector<1x96xf32> to vector<1x96xf32>
    %93 = vector.broadcast %92 : vector<1x96xf32> to vector<32x96xf32>
    %c3 = arith.constant 3 : index
    %c0_62 = arith.constant 0 : index
    %c0_63 = arith.constant 0 : index
    %94 = vector.load %arg3[%c3, %c0_62, %c0_63] : memref<18x32x96xf32, #tpu.memory_space<vmem>>, vector<1x32x96xf32>
    %95 = vector.shape_cast %94 : vector<1x32x96xf32> to vector<32x96xf32>
    %cst_64 = arith.constant dense<0.000000e+00> : vector<32x96xf32>
    %96 = tpu.matmul %74, %95, %cst_64 {dimension_numbers = #tpu.dot_dimension_numbers<[1], [0], [0], [1], [0, 0, 1, 1], [], []>} : vector<32x32xf32>, vector<32x96xf32>, vector<32x96xf32> -> vector<32x96xf32>
    %97 = arith.addf %93, %96 : vector<32x96xf32>
    %c9 = arith.constant 9 : index
    %c0_65 = arith.constant 0 : index
    %c0_66 = arith.constant 0 : index
    %98 = vector.load %arg3[%c9, %c0_65, %c0_66] : memref<18x32x96xf32, #tpu.memory_space<vmem>>, vector<1x32x96xf32>
    %99 = vector.shape_cast %98 : vector<1x32x96xf32> to vector<32x96xf32>
    %cst_67 = arith.constant dense<0.000000e+00> : vector<32x96xf32>
    %100 = tpu.matmul %79, %99, %cst_67 {dimension_numbers = #tpu.dot_dimension_numbers<[1], [0], [0], [1], [0, 0, 1, 1], [], []>} : vector<32x32xf32>, vector<32x96xf32>, vector<32x96xf32> -> vector<32x96xf32>
    %101 = arith.addf %97, %100 : vector<32x96xf32>
    %c4 = arith.constant 4 : index
    %c0_68 = arith.constant 0 : index
    %c0_69 = arith.constant 0 : index
    %102 = vector.load %arg3[%c4, %c0_68, %c0_69] : memref<18x32x96xf32, #tpu.memory_space<vmem>>, vector<1x32x96xf32>
    %103 = vector.shape_cast %102 : vector<1x32x96xf32> to vector<32x96xf32>
    %cst_70 = arith.constant dense<0.000000e+00> : vector<32x96xf32>
    %104 = tpu.matmul %80, %103, %cst_70 {dimension_numbers = #tpu.dot_dimension_numbers<[1], [0], [0], [1], [0, 0, 1, 1], [], []>} : vector<32x32xf32>, vector<32x96xf32>, vector<32x96xf32> -> vector<32x96xf32>
    %105 = arith.addf %101, %104 : vector<32x96xf32>
    %c10 = arith.constant 10 : index
    %c0_71 = arith.constant 0 : index
    %c0_72 = arith.constant 0 : index
    %106 = vector.load %arg3[%c10, %c0_71, %c0_72] : memref<18x32x96xf32, #tpu.memory_space<vmem>>, vector<1x32x96xf32>
    %107 = vector.shape_cast %106 : vector<1x32x96xf32> to vector<32x96xf32>
    %cst_73 = arith.constant dense<0.000000e+00> : vector<32x96xf32>
    %108 = tpu.matmul %85, %107, %cst_73 {dimension_numbers = #tpu.dot_dimension_numbers<[1], [0], [0], [1], [0, 0, 1, 1], [], []>} : vector<32x32xf32>, vector<32x96xf32>, vector<32x96xf32> -> vector<32x96xf32>
    %109 = arith.addf %105, %108 : vector<32x96xf32>
    %c5 = arith.constant 5 : index
    %c0_74 = arith.constant 0 : index
    %c0_75 = arith.constant 0 : index
    %110 = vector.load %arg3[%c5, %c0_74, %c0_75] : memref<18x32x96xf32, #tpu.memory_space<vmem>>, vector<1x32x96xf32>
    %111 = vector.shape_cast %110 : vector<1x32x96xf32> to vector<32x96xf32>
    %cst_76 = arith.constant dense<0.000000e+00> : vector<32x96xf32>
    %112 = tpu.matmul %84, %111, %cst_76 {dimension_numbers = #tpu.dot_dimension_numbers<[1], [0], [0], [1], [0, 0, 1, 1], [], []>} : vector<32x32xf32>, vector<32x96xf32>, vector<32x96xf32> -> vector<32x96xf32>
    %113 = arith.addf %109, %112 : vector<32x96xf32>
    %c11 = arith.constant 11 : index
    %c0_77 = arith.constant 0 : index
    %c0_78 = arith.constant 0 : index
    %114 = vector.load %arg3[%c11, %c0_77, %c0_78] : memref<18x32x96xf32, #tpu.memory_space<vmem>>, vector<1x32x96xf32>
    %115 = vector.shape_cast %114 : vector<1x32x96xf32> to vector<32x96xf32>
    %cst_79 = arith.constant dense<0.000000e+00> : vector<32x96xf32>
    %116 = tpu.matmul %89, %115, %cst_79 {dimension_numbers = #tpu.dot_dimension_numbers<[1], [0], [0], [1], [0, 0, 1, 1], [], []>} : vector<32x32xf32>, vector<32x96xf32>, vector<32x96xf32> -> vector<32x96xf32>
    %117 = arith.addf %113, %116 : vector<32x96xf32>
    %118 = vector.extract_strided_slice %117 {offsets = [0, 0], sizes = [32, 64], strides = [1, 1]} : vector<32x96xf32> to vector<32x64xf32>
    %119 = arith.negf %118 : vector<32x64xf32>
    %120 = math.exp %119 : vector<32x64xf32>
    %cst_80 = arith.constant 1.000000e+00 : f32
    %121 = vector.broadcast %cst_80 : f32 to vector<32x64xf32>
    %122 = arith.addf %121, %120 : vector<32x64xf32>
    %123 = arith.divf %121, %122 : vector<32x64xf32>
    %124 = vector.extract_strided_slice %123 {offsets = [0, 0], sizes = [32, 32], strides = [1, 1]} : vector<32x64xf32> to vector<32x32xf32>
    %125 = vector.extract_strided_slice %123 {offsets = [0, 32], sizes = [32, 32], strides = [1, 1]} : vector<32x64xf32> to vector<32x32xf32>
    %126 = arith.mulf %124, %79 : vector<32x32xf32>
    %cst_81 = arith.constant dense<0.000000e+00> : vector<32x32xf32>
    %127 = tpu.matmul %0, %126, %cst_81 {dimension_numbers = #tpu.dot_dimension_numbers<[1], [0], [0], [1], [0, 0, 1, 1], [], []>} : vector<32x32xf32>, vector<32x32xf32>, vector<32x32xf32> -> vector<32x32xf32>
    %cst_82 = arith.constant dense<0.000000e+00> : vector<32x32xf32>
    %128 = tpu.matmul %0, %127, %cst_82 {dimension_numbers = #tpu.dot_dimension_numbers<[1], [0], [0], [1], [0, 0, 1, 1], [], []>} : vector<32x32xf32>, vector<32x32xf32>, vector<32x32xf32> -> vector<32x32xf32>
    %cst_83 = arith.constant 2.000000e+00 : f32
    %129 = vector.broadcast %cst_83 : f32 to vector<32x32xf32>
    %130 = arith.mulf %129, %128 : vector<32x32xf32>
    %131 = arith.subf %130, %126 : vector<32x32xf32>
    %c15 = arith.constant 15 : index
    %c0_84 = arith.constant 0 : index
    %c0_85 = arith.constant 0 : index
    %132 = vector.load %arg3[%c15, %c0_84, %c0_85] : memref<18x32x96xf32, #tpu.memory_space<vmem>>, vector<1x32x96xf32>
    %133 = vector.shape_cast %132 : vector<1x32x96xf32> to vector<32x96xf32>
    %cst_86 = arith.constant dense<0.000000e+00> : vector<32x96xf32>
    %134 = tpu.matmul %126, %133, %cst_86 {dimension_numbers = #tpu.dot_dimension_numbers<[1], [0], [0], [1], [0, 0, 1, 1], [], []>} : vector<32x32xf32>, vector<32x96xf32>, vector<32x96xf32> -> vector<32x96xf32>
    %135 = arith.addf %117, %134 : vector<32x96xf32>
    %c16 = arith.constant 16 : index
    %c0_87 = arith.constant 0 : index
    %c0_88 = arith.constant 0 : index
    %136 = vector.load %arg3[%c16, %c0_87, %c0_88] : memref<18x32x96xf32, #tpu.memory_space<vmem>>, vector<1x32x96xf32>
    %137 = vector.shape_cast %136 : vector<1x32x96xf32> to vector<32x96xf32>
    %cst_89 = arith.constant dense<0.000000e+00> : vector<32x96xf32>
    %138 = tpu.matmul %127, %137, %cst_89 {dimension_numbers = #tpu.dot_dimension_numbers<[1], [0], [0], [1], [0, 0, 1, 1], [], []>} : vector<32x32xf32>, vector<32x96xf32>, vector<32x96xf32> -> vector<32x96xf32>
    %139 = arith.addf %135, %138 : vector<32x96xf32>
    %c17 = arith.constant 17 : index
    %c0_90 = arith.constant 0 : index
    %c0_91 = arith.constant 0 : index
    %140 = vector.load %arg3[%c17, %c0_90, %c0_91] : memref<18x32x96xf32, #tpu.memory_space<vmem>>, vector<1x32x96xf32>
    %141 = vector.shape_cast %140 : vector<1x32x96xf32> to vector<32x96xf32>
    %cst_92 = arith.constant dense<0.000000e+00> : vector<32x96xf32>
    %142 = tpu.matmul %131, %141, %cst_92 {dimension_numbers = #tpu.dot_dimension_numbers<[1], [0], [0], [1], [0, 0, 1, 1], [], []>} : vector<32x32xf32>, vector<32x96xf32>, vector<32x96xf32> -> vector<32x96xf32>
    %143 = arith.addf %139, %142 : vector<32x96xf32>
    %144 = vector.extract_strided_slice %143 {offsets = [0, 64], sizes = [32, 32], strides = [1, 1]} : vector<32x96xf32> to vector<32x32xf32>
    %145 = math.tanh %144 : vector<32x32xf32>
    %146 = arith.mulf %125, %79 : vector<32x32xf32>
    %cst_93 = arith.constant 1.000000e+00 : f32
    %147 = vector.broadcast %cst_93 : f32 to vector<32x32xf32>
    %148 = arith.subf %147, %125 : vector<32x32xf32>
    %149 = arith.mulf %148, %145 : vector<32x32xf32>
    %150 = arith.addf %146, %149 : vector<32x32xf32>
    %c1_94 = arith.constant 1 : index
    %c0_95 = arith.constant 0 : index
    %c0_96 = arith.constant 0 : index
    %151 = vector.load %arg5[%c1_94, %c0_95, %c0_96] : memref<2x32x32xf32, #tpu.memory_space<vmem>>, vector<1x32x32xf32>
    %152 = vector.shape_cast %151 : vector<1x32x32xf32> to vector<32x32xf32>
    %153 = vector.shape_cast %150 : vector<32x32xf32> to vector<1x32x32xf32>
    tpu.vector_store %arg5[%c1_94, %c0_95, %c0_96], %153 {strides = array<i32>} : memref<2x32x32xf32, #tpu.memory_space<vmem>>, vector<1x32x32xf32>,
    return
  }
}

</mosaic_0001>

<llo_original>
// kernel: encoder_forward.1
$region0: #{encoder_forward.1}
  #allocation0 [shape = 'u32[]', space=smem, size = 0x4, offset = 0x4, fixed_abs, tag = 'smem constant byte address 0x4 - core index']
  #allocation1 [shape = 'u32[72,128]{1,0:T(1,128)}', space=vmem, size = 0x9000, scoped, tag = 'internal scratch']
  %s0 = inlined_call_operand.vmem [shape: f32[32,32], index: 0, kind: input, shape index: {}]
  %s1 = inlined_call_operand.vmem [shape: f32[32,32], index: 1, kind: input, shape index: {}]
  %s2 = inlined_call_operand.vmem [shape: f32[2,32,32], index: 2, kind: input, shape index: {}, may-alias: {2,5}]
  %s3 = inlined_call_operand.hbm [shape: f32[18,32,96], index: 3, kind: input, shape index: {}]
  %s4 = inlined_call_operand.vmem [shape: f32[2,1,96], index: 4, kind: input, shape index: {}]
  %s5 = inlined_call_operand.vmem [shape: f32[2,32,32], index: 5, kind: output, shape index: {}, may-alias: {2,5}]
  %s6 = sld [smem:[#allocation0]]
  $region34: #{encoder_forward.1} parent=0
    _
  %s8 = ssub.s32 1, %s6
  %s9 = scalar_select 0, %s8, %s6
  $region1: #{encoder_forward.1} parent=0
    #allocation2 [shape = 'u8[294912]{0}', space=vmem, size = 0x48000, scoped, tag = 'input window, operand 3, single buffered']
    #allocation3 [shape = 's32[1]{0}', space=sflag, size = 0x4, scoped, tag = 'scoped memory for encoder_forward.1']
    %10 = vsyncpa [#allocation3], 0
    // Predicated region
    $region2: #{encoder_forward.1} parent=1 // pred_check
      _
    $region3: #{encoder_forward.1} parent=1 // pred_check_branch
      %12 = sbr.rel (0) target = $region5
    $region4: #{encoder_forward.1} parent=1 // pred_region
      _
    $region5: #{encoder_forward.1} parent=1 // pred_fallthru
      _
    // Predicated region
    $region6: #{encoder_forward.1} parent=1 // pred_check
      _
    $region7: #{encoder_forward.1} parent=1 // pred_check_branch
      %14 = sbr.rel (0) target = $region9
    $region8: #{encoder_forward.1} parent=1 // pred_region
      _
    $region9: #{encoder_forward.1} parent=1 // pred_fallthru
      _
    // Predicated region
    $region10: #{encoder_forward.1} parent=1 // pred_check
      _
    $region11: #{encoder_forward.1} parent=1 // pred_check_branch
      %16 = sbr.rel (0) target = $region13
    $region12: #{encoder_forward.1} parent=1 // pred_region
      _
    $region13: #{encoder_forward.1} parent=1 // pred_fallthru
      _
    // Predicated region
    $region14: #{encoder_forward.1} parent=1 // pred_check
      _
    $region15: #{encoder_forward.1} parent=1 // pred_check_branch
      %18 = sbr.rel (0) target = $region17
    $region16: #{encoder_forward.1} parent=1 // pred_region
      %20 = vsyncadd [#allocation3], 0
      %s21 = sshll.u32 %s3, 4
      %s22 = int_to_ptr.hbm [resolvable:$true] %s21
      %s23 = sshll.u32 [#allocation2], 4
      %s24 = int_to_ptr.vmem [resolvable:$true] %s23
      %29 = dma.hbm_to_vmem [thread:$0]  %s22, 9216, %s24, [#allocation3], 128, 128, 8
    $region17: #{encoder_forward.1} parent=1 // pred_fallthru
      _
    // Predicated region
    $region18: #{encoder_forward.1} parent=1 // pred_check
      _
    $region19: #{encoder_forward.1} parent=1 // pred_check_branch
      %31 = sbr.rel (0) target = $region21
    $region20: #{encoder_forward.1} parent=1 // pred_region
      _
    $region21: #{encoder_forward.1} parent=1 // pred_fallthru
      _
    // Predicated region
    $region22: #{encoder_forward.1} parent=1 // pred_check
      _
    $region23: #{encoder_forward.1} parent=1 // pred_check_branch
      %33 = sbr.rel (0) target = $region25
    $region24: #{encoder_forward.1} parent=1 // pred_region
      %35 = dma.done [#allocation3], 9216
    $region25: #{encoder_forward.1} parent=1 // pred_fallthru
      _
    %v36 = vld [vmem:[%s0] sm:$0xff]
    %v37 = vld [vmem:[%s0 + $0x8] sm:$0xff]
    %v38 = vld [vmem:[%s0 + $0x10] sm:$0xff]
    %v39 = vld [vmem:[%s0 + $0x18] sm:$0xff]
    %v40 = vld [vmem:[%s1] sm:$0xff]
    %v41 = vld [vmem:[%s1 + $0x8] sm:$0xff]
    %v42 = vld [vmem:[%s1 + $0x10] sm:$0xff]
    %v43 = vld [vmem:[%s1 + $0x18] sm:$0xff]
    %v44 = vld [vmem:[%s2] sm:$0xff]
    %v45 = vld [vmem:[%s2 + $0x8] sm:$0xff]
    %v46 = vld [vmem:[%s2 + $0x10] sm:$0xff]
    %v47 = vld [vmem:[%s2 + $0x18] sm:$0xff]
    %vm48 = vcmask 261120
    %v50 = vsel %vm48, %v36, 0
    %v53 = vsel %vm48, %v37, 0
    %v56 = vsel %vm48, %v38, 0
    %v59 = vsel %vm48, %v39, 0
    %61 = vmatpush.msra.mxu0 0.0
    %62 = vmatpush.msra.mxu0 0.0
    %63 = vmatpush.msra.mxu0 0.0
    %64 = vmatpush.msra.mxu0 0.0
    %65 = vmatpush.msra.mxu0 0.0
    %66 = vmatpush.msra.mxu0 0.0
    %67 = vmatpush.msra.mxu0 0.0
    %68 = vmatpush.msra.mxu0 0.0
    %69 = vmatpush.msra.mxu0 0.0
    %70 = vmatpush.msra.mxu0 0.0
    %71 = vmatpush.msra.mxu0 0.0
    %72 = vmatpush.msra.mxu0 0.0
    %73 = vmatpush.msra.mxu0 %v43
    %74 = vmatpush.msra.mxu0 %v42
    %75 = vmatpush.msra.mxu0 %v41
    %76 = vmatpush.msra.mxu0 %v40
    %77 = vmatmul.f32.gmra.mxu0 %v50
    %v78 = vpop.f32.mrf.mxu0
    %v79 = vadd.f32 0.0, %v78
    %80 = vmatmul.f32.gmra.mxu0 %v53
    %v81 = vpop.f32.mrf.mxu0
    %v82 = vadd.f32 0.0, %v81
    %83 = vmatmul.f32.gmra.mxu0 %v56
    %v84 = vpop.f32.mrf.mxu0
    %v85 = vadd.f32 0.0, %v84
    %86 = vmatmul.f32.gmra.mxu0 %v59
    %v87 = vpop.f32.mrf.mxu0
    %v88 = vadd.f32 0.0, %v87
    %89 = vdwg.mxu0
    %90 = vmatpush.msra.mxu0 0.0
    %91 = vmatpush.msra.mxu0 0.0
    %92 = vmatpush.msra.mxu0 0.0
    %93 = vmatpush.msra.mxu0 0.0
    %94 = vmatpush.msra.mxu0 0.0
    %95 = vmatpush.msra.mxu0 0.0
    %96 = vmatpush.msra.mxu0 0.0
    %97 = vmatpush.msra.mxu0 0.0
    %98 = vmatpush.msra.mxu0 0.0
    %99 = vmatpush.msra.mxu0 0.0
    %100 = vmatpush.msra.mxu0 0.0
    %101 = vmatpush.msra.mxu0 0.0
    %102 = vmatpush.msra.mxu0 %v88
    %103 = vmatpush.msra.mxu0 %v85
    %104 = vmatpush.msra.mxu0 %v82
    %105 = vmatpush.msra.mxu0 %v79
    %106 = vmatmul.f32.gmra.mxu0 %v50
    %v107 = vpop.f32.mrf.mxu0
    %v108 = vadd.f32 0.0, %v107
    %109 = vmatmul.f32.gmra.mxu0 %v53
    %v110 = vpop.f32.mrf.mxu0
    %v111 = vadd.f32 0.0, %v110
    %112 = vmatmul.f32.gmra.mxu0 %v56
    %v113 = vpop.f32.mrf.mxu0
    %v114 = vadd.f32 0.0, %v113
    %115 = vmatmul.f32.gmra.mxu0 %v59
    %v116 = vpop.f32.mrf.mxu0
    %v117 = vadd.f32 0.0, %v116
    %118 = vdwg.mxu0
    %v119 = vmul.f32 %v108, 2.0
    %v120 = vmul.f32 %v111, 2.0
    %v121 = vmul.f32 %v114, 2.0
    %v122 = vmul.f32 %v117, 2.0
    %v123 = vsub.f32 %v119, %v40
    %v124 = vsub.f32 %v120, %v41
    %v125 = vsub.f32 %v121, %v42
    %v126 = vsub.f32 %v122, %v43
    %127 = vmatpush.msra.mxu0 0.0
    %128 = vmatpush.msra.mxu0 0.0
    %129 = vmatpush.msra.mxu0 0.0
    %130 = vmatpush.msra.mxu0 0.0
    %131 = vmatpush.msra.mxu0 0.0
    %132 = vmatpush.msra.mxu0 0.0
    %133 = vmatpush.msra.mxu0 0.0
    %134 = vmatpush.msra.mxu0 0.0
    %135 = vmatpush.msra.mxu0 0.0
    %136 = vmatpush.msra.mxu0 0.0
    %137 = vmatpush.msra.mxu0 0.0
    %138 = vmatpush.msra.mxu0 0.0
    %139 = vmatpush.msra.mxu0 %v47
    %140 = vmatpush.msra.mxu0 %v46
    %141 = vmatpush.msra.mxu0 %v45
    %142 = vmatpush.msra.mxu0 %v44
    %143 = vmatmul.f32.gmra.mxu0 %v50
    %v144 = vpop.f32.mrf.mxu0
    %v145 = vadd.f32 0.0, %v144
    %146 = vmatmul.f32.gmra.mxu0 %v53
    %v147 = vpop.f32.mrf.mxu0
    %v148 = vadd.f32 0.0, %v147
    %149 = vmatmul.f32.gmra.mxu0 %v56
    %v150 = vpop.f32.mrf.mxu0
    %v151 = vadd.f32 0.0, %v150
    %152 = vmatmul.f32.gmra.mxu0 %v59
    %v153 = vpop.f32.mrf.mxu0
    %v154 = vadd.f32 0.0, %v153
    %155 = vdwg.mxu0
    %156 = vmatpush.msra.mxu0 0.0
    %157 = vmatpush.msra.mxu0 0.0
    %158 = vmatpush.msra.mxu0 0.0
    %159 = vmatpush.msra.mxu0 0.0
    %160 = vmatpush.msra.mxu0 0.0
    %161 = vmatpush.msra.mxu0 0.0
    %162 = vmatpush.msra.mxu0 0.0
    %163 = vmatpush.msra.mxu0 0.0
    %164 = vmatpush.msra.mxu0 0.0
    %165 = vmatpush.msra.mxu0 0.0
    %166 = vmatpush.msra.mxu0 0.0
    %167 = vmatpush.msra.mxu0 0.0
    %168 = vmatpush.msra.mxu0 %v154
    %169 = vmatpush.msra.mxu0 %v151
    %170 = vmatpush.msra.mxu0 %v148
    %171 = vmatpush.msra.mxu0 %v145
    %172 = vmatmul.f32.gmra.mxu0 %v50
    %v173 = vpop.f32.mrf.mxu0
    %v174 = vadd.f32 0.0, %v173
    %175 = vmatmul.f32.gmra.mxu0 %v53
    %v176 = vpop.f32.mrf.mxu0
    %v177 = vadd.f32 0.0, %v176
    %178 = vmatmul.f32.gmra.mxu0 %v56
    %v179 = vpop.f32.mrf.mxu0
    %v180 = vadd.f32 0.0, %v179
    %181 = vmatmul.f32.gmra.mxu0 %v59
    %v182 = vpop.f32.mrf.mxu0
    %v183 = vadd.f32 0.0, %v182
    %184 = vdwg.mxu0
    %v185 = vmul.f32 %v174, 2.0
    %v186 = vmul.f32 %v177, 2.0
    %v187 = vmul.f32 %v180, 2.0
    %v188 = vmul.f32 %v183, 2.0
    %v189 = vsub.f32 %v185, %v44
    %v190 = vsub.f32 %v186, %v45
    %v191 = vsub.f32 %v187, %v46
    %v192 = vsub.f32 %v188, %v47
    %v193 = vld [vmem:[%s4] sm:$0x1]
    %v195 = vperm.slane %v193, 0
    %v197 = vld [vmem:[#allocation2] sm:$0xff]
    %v198 = vld [vmem:[#allocation2 + $0x8] sm:$0xff]
    %v199 = vld [vmem:[#allocation2 + $0x10] sm:$0xff]
    %v200 = vld [vmem:[#allocation2 + $0x18] sm:$0xff]
    %v202 = vsel %vm48, %v40, 0
    %v205 = vsel %vm48, %v41, 0
    %v208 = vsel %vm48, %v42, 0
    %v211 = vsel %vm48, %v43, 0
    %213 = vmatpush.msra.mxu0 0.0
    %214 = vmatpush.msra.mxu0 0.0
    %215 = vmatpush.msra.mxu0 0.0
    %216 = vmatpush.msra.mxu0 0.0
    %217 = vmatpush.msra.mxu0 0.0
    %218 = vmatpush.msra.mxu0 0.0
    %219 = vmatpush.msra.mxu0 0.0
    %220 = vmatpush.msra.mxu0 0.0
    %221 = vmatpush.msra.mxu0 0.0
    %222 = vmatpush.msra.mxu0 0.0
    %223 = vmatpush.msra.mxu0 0.0
    %224 = vmatpush.msra.mxu0 0.0
    %225 = vmatpush.msra.mxu0 %v200
    %226 = vmatpush.msra.mxu0 %v199
    %227 = vmatpush.msra.mxu0 %v198
    %228 = vmatpush.msra.mxu0 %v197
    %229 = vmatmul.f32.gmra.mxu0 %v202
    %v230 = vpop.f32.mrf.mxu0
    %v231 = vadd.f32 0.0, %v230
    %232 = vmatmul.f32.gmra.mxu0 %v205
    %v233 = vpop.f32.mrf.mxu0
    %v234 = vadd.f32 0.0, %v233
    %235 = vmatmul.f32.gmra.mxu0 %v208
    %v236 = vpop.f32.mrf.mxu0
    %v237 = vadd.f32 0.0, %v236
    %238 = vmatmul.f32.gmra.mxu0 %v211
    %v239 = vpop.f32.mrf.mxu0
    %v240 = vadd.f32 0.0, %v239
    %241 = vdwg.mxu0
    %v242 = vadd.f32 %v195, %v231
    %v243 = vadd.f32 %v195, %v234
    %v244 = vadd.f32 %v195, %v237
    %v245 = vadd.f32 %v195, %v240
    %s246 = scalar_lea.vmem [#allocation2], 192
    %v247 = vld [vmem:[%s246] sm:$0xff]
    %v248 = vld [vmem:[%s246 + $0x8] sm:$0xff]
    %v249 = vld [vmem:[%s246 + $0x10] sm:$0xff]
    %v250 = vld [vmem:[%s246 + $0x18] sm:$0xff]
    %v252 = vsel %vm48, %v44, 0
    %v255 = vsel %vm48, %v45, 0
    %v258 = vsel %vm48, %v46, 0
    %v261 = vsel %vm48, %v47, 0
    %263 = vmatpush.msra.mxu0 0.0
    %264 = vmatpush.msra.mxu0 0.0
    %265 = vmatpush.msra.mxu0 0.0
    %266 = vmatpush.msra.mxu0 0.0
    %267 = vmatpush.msra.mxu0 0.0
    %268 = vmatpush.msra.mxu0 0.0
    %269 = vmatpush.msra.mxu0 0.0
    %270 = vmatpush.msra.mxu0 0.0
    %271 = vmatpush.msra.mxu0 0.0
    %272 = vmatpush.msra.mxu0 0.0
    %273 = vmatpush.msra.mxu0 0.0
    %274 = vmatpush.msra.mxu0 0.0
    %275 = vmatpush.msra.mxu0 %v250
    %276 = vmatpush.msra.mxu0 %v249
    %277 = vmatpush.msra.mxu0 %v248
    %278 = vmatpush.msra.mxu0 %v247
    %279 = vmatmul.f32.gmra.mxu0 %v252
    %v280 = vpop.f32.mrf.mxu0
    %v281 = vadd.f32 0.0, %v280
    %282 = vmatmul.f32.gmra.mxu0 %v255
    %v283 = vpop.f32.mrf.mxu0
    %v284 = vadd.f32 0.0, %v283
    %285 = vmatmul.f32.gmra.mxu0 %v258
    %v286 = vpop.f32.mrf.mxu0
    %v287 = vadd.f32 0.0, %v286
    %288 = vmatmul.f32.gmra.mxu0 %v261
    %v289 = vpop.f32.mrf.mxu0
    %v290 = vadd.f32 0.0, %v289
    %291 = vdwg.mxu0
    %v292 = vadd.f32 %v242, %v281
    %v293 = vadd.f32 %v243, %v284
    %v294 = vadd.f32 %v244, %v287
    %v295 = vadd.f32 %v245, %v290
    %s296 = scalar_lea.vmem [#allocation2], 32
    %v297 = vld [vmem:[%s296] sm:$0xff]
    %v298 = vld [vmem:[%s296 + $0x8] sm:$0xff]
    %v299 = vld [vmem:[%s296 + $0x10] sm:$0xff]
    %v300 = vld [vmem:[%s296 + $0x18] sm:$0xff]
    %v302 = vsel %vm48, %v79, 0
    %v305 = vsel %vm48, %v82, 0
    %v308 = vsel %vm48, %v85, 0
    %v311 = vsel %vm48, %v88, 0
    %313 = vmatpush.msra.mxu0 0.0
    %314 = vmatpush.msra.mxu0 0.0
    %315 = vmatpush.msra.mxu0 0.0
    %316 = vmatpush.msra.mxu0 0.0
    %317 = vmatpush.msra.mxu0 0.0
    %318 = vmatpush.msra.mxu0 0.0
    %319 = vmatpush.msra.mxu0 0.0
    %320 = vmatpush.msra.mxu0 0.0
    %321 = vmatpush.msra.mxu0 0.0
    %322 = vmatpush.msra.mxu0 0.0
    %323 = vmatpush.msra.mxu0 0.0
    %324 = vmatpush.msra.mxu0 0.0
    %325 = vmatpush.msra.mxu0 %v300
    %326 = vmatpush.msra.mxu0 %v299
    %327 = vmatpush.msra.mxu0 %v298
    %328 = vmatpush.msra.mxu0 %v297
    %329 = vmatmul.f32.gmra.mxu0 %v302
    %v330 = vpop.f32.mrf.mxu0
    %v331 = vadd.f32 0.0, %v330
    %332 = vmatmul.f32.gmra.mxu0 %v305
    %v333 = vpop.f32.mrf.mxu0
    %v334 = vadd.f32 0.0, %v333
    %335 = vmatmul.f32.gmra.mxu0 %v308
    %v336 = vpop.f32.mrf.mxu0
    %v337 = vadd.f32 0.0, %v336
    %338 = vmatmul.f32.gmra.mxu0 %v311
    %v339 = vpop.f32.mrf.mxu0
    %v340 = vadd.f32 0.0, %v339
    %341 = vdwg.mxu0
    %v342 = vadd.f32 %v292, %v331
    %v343 = vadd.f32 %v293, %v334
    %v344 = vadd.f32 %v294, %v337
    %v345 = vadd.f32 %v295, %v340
    %s346 = scalar_lea.vmem [#allocation2], 224
    %v347 = vld [vmem:[%s346] sm:$0xff]
    %v348 = vld [vmem:[%s346 + $0x8] sm:$0xff]
    %v349 = vld [vmem:[%s346 + $0x10] sm:$0xff]
    %v350 = vld [vmem:[%s346 + $0x18] sm:$0xff]
    %v352 = vsel %vm48, %v145, 0
    %v355 = vsel %vm48, %v148, 0
    %v358 = vsel %vm48, %v151, 0
    %v361 = vsel %vm48, %v154, 0
    %363 = vmatpush.msra.mxu0 0.0
    %364 = vmatpush.msra.mxu0 0.0
    %365 = vmatpush.msra.mxu0 0.0
    %366 = vmatpush.msra.mxu0 0.0
    %367 = vmatpush.msra.mxu0 0.0
    %368 = vmatpush.msra.mxu0 0.0
    %369 = vmatpush.msra.mxu0 0.0
    %370 = vmatpush.msra.mxu0 0.0
    %371 = vmatpush.msra.mxu0 0.0
    %372 = vmatpush.msra.mxu0 0.0
    %373 = vmatpush.msra.mxu0 0.0
    %374 = vmatpush.msra.mxu0 0.0
    %375 = vmatpush.msra.mxu0 %v350
    %376 = vmatpush.msra.mxu0 %v349
    %377 = vmatpush.msra.mxu0 %v348
    %378 = vmatpush.msra.mxu0 %v347
    %379 = vmatmul.f32.gmra.mxu0 %v352
    %v380 = vpop.f32.mrf.mxu0
    %v381 = vadd.f32 0.0, %v380
    %382 = vmatmul.f32.gmra.mxu0 %v355
    %v383 = vpop.f32.mrf.mxu0
    %v384 = vadd.f32 0.0, %v383
    %385 = vmatmul.f32.gmra.mxu0 %v358
    %v386 = vpop.f32.mrf.mxu0
    %v387 = vadd.f32 0.0, %v386
    %388 = vmatmul.f32.gmra.mxu0 %v361
    %v389 = vpop.f32.mrf.mxu0
    %v390 = vadd.f32 0.0, %v389
    %391 = vdwg.mxu0
    %v392 = vadd.f32 %v342, %v381
    %v393 = vadd.f32 %v343, %v384
    %v394 = vadd.f32 %v344, %v387
    %v395 = vadd.f32 %v345, %v390
    %s396 = scalar_lea.vmem [#allocation2], 64
    %v397 = vld [vmem:[%s396] sm:$0xff]
    %v398 = vld [vmem:[%s396 + $0x8] sm:$0xff]
    %v399 = vld [vmem:[%s396 + $0x10] sm:$0xff]
    %v400 = vld [vmem:[%s396 + $0x18] sm:$0xff]
    %v402 = vsel %vm48, %v123, 0
    %v405 = vsel %vm48, %v124, 0
    %v408 = vsel %vm48, %v125, 0
    %v411 = vsel %vm48, %v126, 0
    %413 = vmatpush.msra.mxu0 0.0
    %414 = vmatpush.msra.mxu0 0.0
    %415 = vmatpush.msra.mxu0 0.0
    %416 = vmatpush.msra.mxu0 0.0
    %417 = vmatpush.msra.mxu0 0.0
    %418 = vmatpush.msra.mxu0 0.0
    %419 = vmatpush.msra.mxu0 0.0
    %420 = vmatpush.msra.mxu0 0.0
    %421 = vmatpush.msra.mxu0 0.0
    %422 = vmatpush.msra.mxu0 0.0
    %423 = vmatpush.msra.mxu0 0.0
    %424 = vmatpush.msra.mxu0 0.0
    %425 = vmatpush.msra.mxu0 %v400
    %426 = vmatpush.msra.mxu0 %v399
    %427 = vmatpush.msra.mxu0 %v398
    %428 = vmatpush.msra.mxu0 %v397
    %429 = vmatmul.f32.gmra.mxu0 %v402
    %v430 = vpop.f32.mrf.mxu0
    %v431 = vadd.f32 0.0, %v430
    %432 = vmatmul.f32.gmra.mxu0 %v405
    %v433 = vpop.f32.mrf.mxu0
    %v434 = vadd.f32 0.0, %v433
    %435 = vmatmul.f32.gmra.mxu0 %v408
    %v436 = vpop.f32.mrf.mxu0
    %v437 = vadd.f32 0.0, %v436
    %438 = vmatmul.f32.gmra.mxu0 %v411
    %v439 = vpop.f32.mrf.mxu0
    %v440 = vadd.f32 0.0, %v439
    %441 = vdwg.mxu0
    %v442 = vadd.f32 %v392, %v431
    %v443 = vadd.f32 %v393, %v434
    %v444 = vadd.f32 %v394, %v437
    %v445 = vadd.f32 %v395, %v440
    %s446 = scalar_lea.vmem [#allocation2], 256
    %v447 = vld [vmem:[%s446] sm:$0xff]
    %v448 = vld [vmem:[%s446 + $0x8] sm:$0xff]
    %v449 = vld [vmem:[%s446 + $0x10] sm:$0xff]
    %v450 = vld [vmem:[%s446 + $0x18] sm:$0xff]
    %v452 = vsel %vm48, %v189, 0
    %v455 = vsel %vm48, %v190, 0
    %v458 = vsel %vm48, %v191, 0
    %v461 = vsel %vm48, %v192, 0
    %463 = vmatpush.msra.mxu0 0.0
    %464 = vmatpush.msra.mxu0 0.0
    %465 = vmatpush.msra.mxu0 0.0
    %466 = vmatpush.msra.mxu0 0.0
    %467 = vmatpush.msra.mxu0 0.0
    %468 = vmatpush.msra.mxu0 0.0
    %469 = vmatpush.msra.mxu0 0.0
    %470 = vmatpush.msra.mxu0 0.0
    %471 = vmatpush.msra.mxu0 0.0
    %472 = vmatpush.msra.mxu0 0.0
    %473 = vmatpush.msra.mxu0 0.0
    %474 = vmatpush.msra.mxu0 0.0
    %475 = vmatpush.msra.mxu0 %v450
    %476 = vmatpush.msra.mxu0 %v449
    %477 = vmatpush.msra.mxu0 %v448
    %478 = vmatpush.msra.mxu0 %v447
    %479 = vmatmul.f32.gmra.mxu0 %v452
    %v480 = vpop.f32.mrf.mxu0
    %v481 = vadd.f32 0.0, %v480
    %482 = vmatmul.f32.gmra.mxu0 %v455
    %v483 = vpop.f32.mrf.mxu0
    %v484 = vadd.f32 0.0, %v483
    %485 = vmatmul.f32.gmra.mxu0 %v458
    %v486 = vpop.f32.mrf.mxu0
    %v487 = vadd.f32 0.0, %v486
    %488 = vmatmul.f32.gmra.mxu0 %v461
    %v489 = vpop.f32.mrf.mxu0
    %v490 = vadd.f32 0.0, %v489
    %491 = vdwg.mxu0
    %v492 = vadd.f32 %v442, %v481
    %v493 = vadd.f32 %v443, %v484
    %v494 = vadd.f32 %v444, %v487
    %v495 = vadd.f32 %v445, %v490
    %v496 = vxor.u32 %v492, 2147483648
    %v497 = vxor.u32 %v493, 2147483648
    %v498 = vxor.u32 %v494, 2147483648
    %v499 = vxor.u32 %v495, 2147483648
    %v500 = vmul.f32 %v496, 1.442695
    %v501 = vpow.pop %v500
    %v502 = vmul.f32 %v497, 1.442695
    %v503 = vpow.pop %v502
    %v504 = vmul.f32 %v498, 1.442695
    %v505 = vpow.pop %v504
    %v506 = vmul.f32 %v499, 1.442695
    %v507 = vpow.pop %v506
    %v508 = vadd.f32 %v501, 1.0
    %v509 = vadd.f32 %v503, 1.0
    %v510 = vadd.f32 %v505, 1.0
    %v511 = vadd.f32 %v507, 1.0
    %v512 = vrcp.pop %v508
    %v513 = vmul.f32 %v508, %v512
    %v514 = vsub.f32 1.0, %v513
    %v515 = vmul.f32 %v512, %v514
    %v516 = vadd.f32 %v512, %v515
    %vm517 = vweird.f32 %v508
    %vm518 = vweird.f32 %v512
    %vm519 = vmor %vm517, %vm518
    %v520 = vsel %vm519, %v512, %v516
    %v521 = vand.u32 2147483647, %v508
    %vm522 = vcmp.eq.f32.partialorder %v521, 8.507059e+37
    %v523 = vand.u32 %v508, 2147483648
    %v524 = vor.u32 1.1754944e-38, %v523
    %v525 = vsel %vm522, %v524, %v520
    %v526 = vmul.f32 1.0, %v525
    %v527 = vrcp.pop %v509
    %v528 = vmul.f32 %v509, %v527
    %v529 = vsub.f32 1.0, %v528
    %v530 = vmul.f32 %v527, %v529
    %v531 = vadd.f32 %v527, %v530
    %vm532 = vweird.f32 %v509
    %vm533 = vweird.f32 %v527
    %vm534 = vmor %vm532, %vm533
    %v535 = vsel %vm534, %v527, %v531
    %v536 = vand.u32 2147483647, %v509
    %vm537 = vcmp.eq.f32.partialorder %v536, 8.507059e+37
    %v538 = vand.u32 %v509, 2147483648
    %v539 = vor.u32 1.1754944e-38, %v538
    %v540 = vsel %vm537, %v539, %v535
    %v541 = vmul.f32 1.0, %v540
    %v542 = vrcp.pop %v510
    %v543 = vmul.f32 %v510, %v542
    %v544 = vsub.f32 1.0, %v543
    %v545 = vmul.f32 %v542, %v544
    %v546 = vadd.f32 %v542, %v545
    %vm547 = vweird.f32 %v510
    %vm548 = vweird.f32 %v542
    %vm549 = vmor %vm547, %vm548
    %v550 = vsel %vm549, %v542, %v546
    %v551 = vand.u32 2147483647, %v510
    %vm552 = vcmp.eq.f32.partialorder %v551, 8.507059e+37
    %v553 = vand.u32 %v510, 2147483648
    %v554 = vor.u32 1.1754944e-38, %v553
    %v555 = vsel %vm552, %v554, %v550
    %v556 = vmul.f32 1.0, %v555
    %v557 = vrcp.pop %v511
    %v558 = vmul.f32 %v511, %v557
    %v559 = vsub.f32 1.0, %v558
    %v560 = vmul.f32 %v557, %v559
    %v561 = vadd.f32 %v557, %v560
    %vm562 = vweird.f32 %v511
    %vm563 = vweird.f32 %v557
    %vm564 = vmor %vm562, %vm563
    %v565 = vsel %vm564, %v557, %v561
    %v566 = vand.u32 2147483647, %v511
    %vm567 = vcmp.eq.f32.partialorder %v566, 8.507059e+37
    %v568 = vand.u32 %v511, 2147483648
    %v569 = vor.u32 1.1754944e-38, %v568
    %v570 = vsel %vm567, %v569, %v565
    %v571 = vmul.f32 1.0, %v570
    %v572 = vmul.f32 %v526, %v44
    %v573 = vmul.f32 %v541, %v45
    %v574 = vmul.f32 %v556, %v46
    %v575 = vmul.f32 %v571, %v47
    %576 = vmatpush.msra.mxu0 0.0
    %577 = vmatpush.msra.mxu0 0.0
    %578 = vmatpush.msra.mxu0 0.0
    %579 = vmatpush.msra.mxu0 0.0
    %580 = vmatpush.msra.mxu0 0.0
    %581 = vmatpush.msra.mxu0 0.0
    %582 = vmatpush.msra.mxu0 0.0
    %583 = vmatpush.msra.mxu0 0.0
    %584 = vmatpush.msra.mxu0 0.0
    %585 = vmatpush.msra.mxu0 0.0
    %586 = vmatpush.msra.mxu0 0.0
    %587 = vmatpush.msra.mxu0 0.0
    %588 = vmatpush.msra.mxu0 %v575
    %589 = vmatpush.msra.mxu0 %v574
    %590 = vmatpush.msra.mxu0 %v573
    %591 = vmatpush.msra.mxu0 %v572
    %592 = vmatmul.f32.gmra.mxu0 %v50
    %v593 = vpop.f32.mrf.mxu0
    %v594 = vadd.f32 0.0, %v593
    %595 = vmatmul.f32.gmra.mxu0 %v53
    %v596 = vpop.f32.mrf.mxu0
    %v597 = vadd.f32 0.0, %v596
    %598 = vmatmul.f32.gmra.mxu0 %v56
    %v599 = vpop.f32.mrf.mxu0
    %v600 = vadd.f32 0.0, %v599
    %601 = vmatmul.f32.gmra.mxu0 %v59
    %v602 = vpop.f32.mrf.mxu0
    %v603 = vadd.f32 0.0, %v602
    %604 = vdwg.mxu0
    %605 = vmatpush.msra.mxu0 0.0
    %606 = vmatpush.msra.mxu0 0.0
    %607 = vmatpush.msra.mxu0 0.0
    %608 = vmatpush.msra.mxu0 0.0
    %609 = vmatpush.msra.mxu0 0.0
    %610 = vmatpush.msra.mxu0 0.0
    %611 = vmatpush.msra.mxu0 0.0
    %612 = vmatpush.msra.mxu0 0.0
    %613 = vmatpush.msra.mxu0 0.0
    %614 = vmatpush.msra.mxu0 0.0
    %615 = vmatpush.msra.mxu0 0.0
    %616 = vmatpush.msra.mxu0 0.0
    %617 = vmatpush.msra.mxu0 %v603
    %618 = vmatpush.msra.mxu0 %v600
    %619 = vmatpush.msra.mxu0 %v597
    %620 = vmatpush.msra.mxu0 %v594
    %621 = vmatmul.f32.gmra.mxu0 %v50
    %v622 = vpop.f32.mrf.mxu0
    %v623 = vadd.f32 0.0, %v622
    %624 = vmatmul.f32.gmra.mxu0 %v53
    %v625 = vpop.f32.mrf.mxu0
    %v626 = vadd.f32 0.0, %v625
    %627 = vmatmul.f32.gmra.mxu0 %v56
    %v628 = vpop.f32.mrf.mxu0
    %v629 = vadd.f32 0.0, %v628
    %630 = vmatmul.f32.gmra.mxu0 %v59
    %v631 = vpop.f32.mrf.mxu0
    %v632 = vadd.f32 0.0, %v631
    %633 = vdwg.mxu0
    %v634 = vmul.f32 %v623, 2.0
    %v635 = vmul.f32 %v626, 2.0
    %v636 = vmul.f32 %v629, 2.0
    %v637 = vmul.f32 %v632, 2.0
    %v638 = vsub.f32 %v634, %v572
    %v639 = vsub.f32 %v635, %v573
    %v640 = vsub.f32 %v636, %v574
    %v641 = vsub.f32 %v637, %v575
    %s642 = scalar_lea.vmem [#allocation2], 384
    %v643 = vld [vmem:[%s642] sm:$0xff]
    %v644 = vld [vmem:[%s642 + $0x8] sm:$0xff]
    %v645 = vld [vmem:[%s642 + $0x10] sm:$0xff]
    %v646 = vld [vmem:[%s642 + $0x18] sm:$0xff]
    %v648 = vsel %vm48, %v572, 0
    %v651 = vsel %vm48, %v573, 0
    %v654 = vsel %vm48, %v574, 0
    %v657 = vsel %vm48, %v575, 0
    %659 = vmatpush.msra.mxu0 0.0
    %660 = vmatpush.msra.mxu0 0.0
    %661 = vmatpush.msra.mxu0 0.0
    %662 = vmatpush.msra.mxu0 0.0
    %663 = vmatpush.msra.mxu0 0.0
    %664 = vmatpush.msra.mxu0 0.0
    %665 = vmatpush.msra.mxu0 0.0
    %666 = vmatpush.msra.mxu0 0.0
    %667 = vmatpush.msra.mxu0 0.0
    %668 = vmatpush.msra.mxu0 0.0
    %669 = vmatpush.msra.mxu0 0.0
    %670 = vmatpush.msra.mxu0 0.0
    %671 = vmatpush.msra.mxu0 %v646
    %672 = vmatpush.msra.mxu0 %v645
    %673 = vmatpush.msra.mxu0 %v644
    %674 = vmatpush.msra.mxu0 %v643
    %675 = vmatmul.f32.gmra.mxu0 %v648
    %v676 = vpop.f32.mrf.mxu0
    %v677 = vadd.f32 0.0, %v676
    %678 = vmatmul.f32.gmra.mxu0 %v651
    %v679 = vpop.f32.mrf.mxu0
    %v680 = vadd.f32 0.0, %v679
    %681 = vmatmul.f32.gmra.mxu0 %v654
    %v682 = vpop.f32.mrf.mxu0
    %v683 = vadd.f32 0.0, %v682
    %684 = vmatmul.f32.gmra.mxu0 %v657
    %v685 = vpop.f32.mrf.mxu0
    %v686 = vadd.f32 0.0, %v685
    %687 = vdwg.mxu0
    %v688 = vadd.f32 %v492, %v677
    %v689 = vadd.f32 %v493, %v680
    %v690 = vadd.f32 %v494, %v683
    %v691 = vadd.f32 %v495, %v686
    %s692 = scalar_lea.vmem [#allocation2], 416
    %v693 = vld [vmem:[%s692] sm:$0xff]
    %v694 = vld [vmem:[%s692 + $0x8] sm:$0xff]
    %v695 = vld [vmem:[%s692 + $0x10] sm:$0xff]
    %v696 = vld [vmem:[%s692 + $0x18] sm:$0xff]
    %v698 = vsel %vm48, %v594, 0
    %v701 = vsel %vm48, %v597, 0
    %v704 = vsel %vm48, %v600, 0
    %v707 = vsel %vm48, %v603, 0
    %709 = vmatpush.msra.mxu0 0.0
    %710 = vmatpush.msra.mxu0 0.0
    %711 = vmatpush.msra.mxu0 0.0
    %712 = vmatpush.msra.mxu0 0.0
    %713 = vmatpush.msra.mxu0 0.0
    %714 = vmatpush.msra.mxu0 0.0
    %715 = vmatpush.msra.mxu0 0.0
    %716 = vmatpush.msra.mxu0 0.0
    %717 = vmatpush.msra.mxu0 0.0
    %718 = vmatpush.msra.mxu0 0.0
    %719 = vmatpush.msra.mxu0 0.0
    %720 = vmatpush.msra.mxu0 0.0
    %721 = vmatpush.msra.mxu0 %v696
    %722 = vmatpush.msra.mxu0 %v695
    %723 = vmatpush.msra.mxu0 %v694
    %724 = vmatpush.msra.mxu0 %v693
    %725 = vmatmul.f32.gmra.mxu0 %v698
    %v726 = vpop.f32.mrf.mxu0
    %v727 = vadd.f32 0.0, %v726
    %728 = vmatmul.f32.gmra.mxu0 %v701
    %v729 = vpop.f32.mrf.mxu0
    %v730 = vadd.f32 0.0, %v729
    %731 = vmatmul.f32.gmra.mxu0 %v704
    %v732 = vpop.f32.mrf.mxu0
    %v733 = vadd.f32 0.0, %v732
    %734 = vmatmul.f32.gmra.mxu0 %v707
    %v735 = vpop.f32.mrf.mxu0
    %v736 = vadd.f32 0.0, %v735
    %737 = vdwg.mxu0
    %v738 = vadd.f32 %v688, %v727
    %v739 = vadd.f32 %v689, %v730
    %v740 = vadd.f32 %v690, %v733
    %v741 = vadd.f32 %v691, %v736
    %s742 = scalar_lea.vmem [#allocation2], 448
    %v743 = vld [vmem:[%s742] sm:$0xff]
    %v744 = vld [vmem:[%s742 + $0x8] sm:$0xff]
    %v745 = vld [vmem:[%s742 + $0x10] sm:$0xff]
    %v746 = vld [vmem:[%s742 + $0x18] sm:$0xff]
    %v748 = vsel %vm48, %v638, 0
    %v751 = vsel %vm48, %v639, 0
    %v754 = vsel %vm48, %v640, 0
    %v757 = vsel %vm48, %v641, 0
    %759 = vmatpush.msra.mxu0 0.0
    %760 = vmatpush.msra.mxu0 0.0
    %761 = vmatpush.msra.mxu0 0.0
    %762 = vmatpush.msra.mxu0 0.0
    %763 = vmatpush.msra.mxu0 0.0
    %764 = vmatpush.msra.mxu0 0.0
    %765 = vmatpush.msra.mxu0 0.0
    %766 = vmatpush.msra.mxu0 0.0
    %767 = vmatpush.msra.mxu0 0.0
    %768 = vmatpush.msra.mxu0 0.0
    %769 = vmatpush.msra.mxu0 0.0
    %770 = vmatpush.msra.mxu0 0.0
    %771 = vmatpush.msra.mxu0 %v746
    %772 = vmatpush.msra.mxu0 %v745
    %773 = vmatpush.msra.mxu0 %v744
    %774 = vmatpush.msra.mxu0 %v743
    %775 = vmatmul.f32.gmra.mxu0 %v748
    %v776 = vpop.f32.mrf.mxu0
    %v777 = vadd.f32 0.0, %v776
    %778 = vmatmul.f32.gmra.mxu0 %v751
    %v779 = vpop.f32.mrf.mxu0
    %v780 = vadd.f32 0.0, %v779
    %781 = vmatmul.f32.gmra.mxu0 %v754
    %v782 = vpop.f32.mrf.mxu0
    %v783 = vadd.f32 0.0, %v782
    %784 = vmatmul.f32.gmra.mxu0 %v757
    %v785 = vpop.f32.mrf.mxu0
    %v786 = vadd.f32 0.0, %v785
    %787 = vdwg.mxu0
    %v788 = vadd.f32 %v738, %v777
    %v789 = vadd.f32 %v739, %v780
    %v790 = vadd.f32 %v740, %v783
    %v791 = vadd.f32 %v741, %v786
    %v792 = vtanh.pop %v788
    %v793 = vtanh.pop %v789
    %v794 = vtanh.pop %v790
    %v795 = vtanh.pop %v791
    %796 = vrot.lane.b32.xlu0 %v44, 32
    %v797 = vpop.permute.xlu0 %796
    %798 = vrot.lane.b32.xlu0 %v45, 32
    %v799 = vpop.permute.xlu0 %798
    %800 = vrot.lane.b32.xlu0 %v46, 32
    %v801 = vpop.permute.xlu0 %800
    %802 = vrot.lane.b32.xlu0 %v47, 32
    %v803 = vpop.permute.xlu0 %802
    %v808 = vmul.f32 %v526, %v797
    %v809 = vmul.f32 %v541, %v799
    %v810 = vmul.f32 %v556, %v801
    %v811 = vmul.f32 %v571, %v803
    %v812 = vsub.f32 1.0, %v526
    %v813 = vsub.f32 1.0, %v541
    %v814 = vsub.f32 1.0, %v556
    %v815 = vsub.f32 1.0, %v571
    %820 = vrot.lane.b32.xlu0 %v792, 96
    %v821 = vpop.permute.xlu0 %820
    %822 = vrot.lane.b32.xlu0 %v793, 96
    %v823 = vpop.permute.xlu0 %822
    %824 = vrot.lane.b32.xlu0 %v794, 96
    %v825 = vpop.permute.xlu0 %824
    %826 = vrot.lane.b32.xlu0 %v795, 96
    %v827 = vpop.permute.xlu0 %826
    %v832 = vmul.f32 %v812, %v821
    %v833 = vmul.f32 %v813, %v823
    %v834 = vmul.f32 %v814, %v825
    %v835 = vmul.f32 %v815, %v827
    %v836 = vadd.f32 %v808, %v832
    %v837 = vadd.f32 %v809, %v833
    %v838 = vadd.f32 %v810, %v834
    %v839 = vadd.f32 %v811, %v835
    %844 = vrot.lane.b32.xlu0 %v836, 96
    %v845 = vpop.permute.xlu0 %844
    %846 = vrot.lane.b32.xlu0 %v837, 96
    %v847 = vpop.permute.xlu0 %846
    %848 = vrot.lane.b32.xlu0 %v838, 96
    %v849 = vpop.permute.xlu0 %848
    %850 = vrot.lane.b32.xlu0 %v839, 96
    %v851 = vpop.permute.xlu0 %850
    %856 = vst.msk [vmem:[%s5] sm:$0xff] %vm48, %v845
    %857 = vst.msk [vmem:[%s5 + $0x8] sm:$0xff] %vm48, %v847
    %858 = vst.msk [vmem:[%s5 + $0x10] sm:$0xff] %vm48, %v849
    %859 = vst.msk [vmem:[%s5 + $0x18] sm:$0xff] %vm48, %v851
    %s860 = scalar_lea.vmem %s2, 32
    %v861 = vld [vmem:[%s860] sm:$0xff]
    %v862 = vld [vmem:[%s860 + $0x8] sm:$0xff]
    %v863 = vld [vmem:[%s860 + $0x10] sm:$0xff]
    %v864 = vld [vmem:[%s860 + $0x18] sm:$0xff]
    %865 = vmatpush.msra.mxu0 0.0
    %866 = vmatpush.msra.mxu0 0.0
    %867 = vmatpush.msra.mxu0 0.0
    %868 = vmatpush.msra.mxu0 0.0
    %869 = vmatpush.msra.mxu0 0.0
    %870 = vmatpush.msra.mxu0 0.0
    %871 = vmatpush.msra.mxu0 0.0
    %872 = vmatpush.msra.mxu0 0.0
    %873 = vmatpush.msra.mxu0 0.0
    %874 = vmatpush.msra.mxu0 0.0
    %875 = vmatpush.msra.mxu0 0.0
    %876 = vmatpush.msra.mxu0 0.0
    %877 = vmatpush.msra.mxu0 %v851
    %878 = vmatpush.msra.mxu0 %v849
    %879 = vmatpush.msra.mxu0 %v847
    %880 = vmatpush.msra.mxu0 %v845
    %881 = vmatmul.f32.gmra.mxu0 %v50
    %v882 = vpop.f32.mrf.mxu0
    %v883 = vadd.f32 0.0, %v882
    %884 = vmatmul.f32.gmra.mxu0 %v53
    %v885 = vpop.f32.mrf.mxu0
    %v886 = vadd.f32 0.0, %v885
    %887 = vmatmul.f32.gmra.mxu0 %v56
    %v888 = vpop.f32.mrf.mxu0
    %v889 = vadd.f32 0.0, %v888
    %890 = vmatmul.f32.gmra.mxu0 %v59
    %v891 = vpop.f32.mrf.mxu0
    %v892 = vadd.f32 0.0, %v891
    %893 = vdwg.mxu0
    %894 = vmatpush.msra.mxu0 0.0
    %895 = vmatpush.msra.mxu0 0.0
    %896 = vmatpush.msra.mxu0 0.0
    %897 = vmatpush.msra.mxu0 0.0
    %898 = vmatpush.msra.mxu0 0.0
    %899 = vmatpush.msra.mxu0 0.0
    %900 = vmatpush.msra.mxu0 0.0
    %901 = vmatpush.msra.mxu0 0.0
    %902 = vmatpush.msra.mxu0 0.0
    %903 = vmatpush.msra.mxu0 0.0
    %904 = vmatpush.msra.mxu0 0.0
    %905 = vmatpush.msra.mxu0 0.0
    %906 = vmatpush.msra.mxu0 %v892
    %907 = vmatpush.msra.mxu0 %v889
    %908 = vmatpush.msra.mxu0 %v886
    %909 = vmatpush.msra.mxu0 %v883
    %910 = vmatmul.f32.gmra.mxu0 %v50
    %v911 = vpop.f32.mrf.mxu0
    %v912 = vadd.f32 0.0, %v911
    %913 = vmatmul.f32.gmra.mxu0 %v53
    %v914 = vpop.f32.mrf.mxu0
    %v915 = vadd.f32 0.0, %v914
    %916 = vmatmul.f32.gmra.mxu0 %v56
    %v917 = vpop.f32.mrf.mxu0
    %v918 = vadd.f32 0.0, %v917
    %919 = vmatmul.f32.gmra.mxu0 %v59
    %v920 = vpop.f32.mrf.mxu0
    %v921 = vadd.f32 0.0, %v920
    %922 = vdwg.mxu0
    %v923 = vmul.f32 %v912, 2.0
    %v924 = vmul.f32 %v915, 2.0
    %v925 = vmul.f32 %v918, 2.0
    %v926 = vmul.f32 %v921, 2.0
    %v927 = vsub.f32 %v923, %v845
    %v928 = vsub.f32 %v924, %v847
    %v929 = vsub.f32 %v925, %v849
    %v930 = vsub.f32 %v926, %v851
    %931 = vmatpush.msra.mxu0 0.0
    %932 = vmatpush.msra.mxu0 0.0
    %933 = vmatpush.msra.mxu0 0.0
    %934 = vmatpush.msra.mxu0 0.0
    %935 = vmatpush.msra.mxu0 0.0
    %936 = vmatpush.msra.mxu0 0.0
    %937 = vmatpush.msra.mxu0 0.0
    %938 = vmatpush.msra.mxu0 0.0
    %939 = vmatpush.msra.mxu0 0.0
    %940 = vmatpush.msra.mxu0 0.0
    %941 = vmatpush.msra.mxu0 0.0
    %942 = vmatpush.msra.mxu0 0.0
    %943 = vmatpush.msra.mxu0 %v864
    %944 = vmatpush.msra.mxu0 %v863
    %945 = vmatpush.msra.mxu0 %v862
    %946 = vmatpush.msra.mxu0 %v861
    %947 = vmatmul.f32.gmra.mxu0 %v50
    %v948 = vpop.f32.mrf.mxu0
    %v949 = vadd.f32 0.0, %v948
    %950 = vmatmul.f32.gmra.mxu0 %v53
    %v951 = vpop.f32.mrf.mxu0
    %v952 = vadd.f32 0.0, %v951
    %953 = vmatmul.f32.gmra.mxu0 %v56
    %v954 = vpop.f32.mrf.mxu0
    %v955 = vadd.f32 0.0, %v954
    %956 = vmatmul.f32.gmra.mxu0 %v59
    %v957 = vpop.f32.mrf.mxu0
    %v958 = vadd.f32 0.0, %v957
    %959 = vdwg.mxu0
    %960 = vmatpush.msra.mxu0 0.0
    %961 = vmatpush.msra.mxu0 0.0
    %962 = vmatpush.msra.mxu0 0.0
    %963 = vmatpush.msra.mxu0 0.0
    %964 = vmatpush.msra.mxu0 0.0
    %965 = vmatpush.msra.mxu0 0.0
    %966 = vmatpush.msra.mxu0 0.0
    %967 = vmatpush.msra.mxu0 0.0
    %968 = vmatpush.msra.mxu0 0.0
    %969 = vmatpush.msra.mxu0 0.0
    %970 = vmatpush.msra.mxu0 0.0
    %971 = vmatpush.msra.mxu0 0.0
    %972 = vmatpush.msra.mxu0 %v958
    %973 = vmatpush.msra.mxu0 %v955
    %974 = vmatpush.msra.mxu0 %v952
    %975 = vmatpush.msra.mxu0 %v949
    %976 = vmatmul.f32.gmra.mxu0 %v50
    %v977 = vpop.f32.mrf.mxu0
    %v978 = vadd.f32 0.0, %v977
    %979 = vmatmul.f32.gmra.mxu0 %v53
    %v980 = vpop.f32.mrf.mxu0
    %v981 = vadd.f32 0.0, %v980
    %982 = vmatmul.f32.gmra.mxu0 %v56
    %v983 = vpop.f32.mrf.mxu0
    %v984 = vadd.f32 0.0, %v983
    %985 = vmatmul.f32.gmra.mxu0 %v59
    %v986 = vpop.f32.mrf.mxu0
    %v987 = vadd.f32 0.0, %v986
    %988 = vdwg.mxu0
    %v989 = vmul.f32 %v978, 2.0
    %v990 = vmul.f32 %v981, 2.0
    %v991 = vmul.f32 %v984, 2.0
    %v992 = vmul.f32 %v987, 2.0
    %v993 = vsub.f32 %v989, %v861
    %v994 = vsub.f32 %v990, %v862
    %v995 = vsub.f32 %v991, %v863
    %v996 = vsub.f32 %v992, %v864
    %s997 = scalar_lea.vmem %s4, 1
    %v998 = vld [vmem:[%s997] sm:$0x1]
    %v1000 = vperm.slane %v998, 0
    %s1002 = scalar_lea.vmem [#allocation2], 96
    %v1003 = vld [vmem:[%s1002] sm:$0xff]
    %v1004 = vld [vmem:[%s1002 + $0x8] sm:$0xff]
    %v1005 = vld [vmem:[%s1002 + $0x10] sm:$0xff]
    %v1006 = vld [vmem:[%s1002 + $0x18] sm:$0xff]
    %v1007 = vsel %vm48, %v845, 0
    %v1009 = vsel %vm48, %v847, 0
    %v1011 = vsel %vm48, %v849, 0
    %v1013 = vsel %vm48, %v851, 0
    %1015 = vmatpush.msra.mxu0 0.0
    %1016 = vmatpush.msra.mxu0 0.0
    %1017 = vmatpush.msra.mxu0 0.0
    %1018 = vmatpush.msra.mxu0 0.0
    %1019 = vmatpush.msra.mxu0 0.0
    %1020 = vmatpush.msra.mxu0 0.0
    %1021 = vmatpush.msra.mxu0 0.0
    %1022 = vmatpush.msra.mxu0 0.0
    %1023 = vmatpush.msra.mxu0 0.0
    %1024 = vmatpush.msra.mxu0 0.0
    %1025 = vmatpush.msra.mxu0 0.0
    %1026 = vmatpush.msra.mxu0 0.0
    %1027 = vmatpush.msra.mxu0 %v1006
    %1028 = vmatpush.msra.mxu0 %v1005
    %1029 = vmatpush.msra.mxu0 %v1004
    %1030 = vmatpush.msra.mxu0 %v1003
    %1031 = vmatmul.f32.gmra.mxu0 %v1007
    %v1032 = vpop.f32.mrf.mxu0
    %v1033 = vadd.f32 0.0, %v1032
    %1034 = vmatmul.f32.gmra.mxu0 %v1009
    %v1035 = vpop.f32.mrf.mxu0
    %v1036 = vadd.f32 0.0, %v1035
    %1037 = vmatmul.f32.gmra.mxu0 %v1011
    %v1038 = vpop.f32.mrf.mxu0
    %v1039 = vadd.f32 0.0, %v1038
    %1040 = vmatmul.f32.gmra.mxu0 %v1013
    %v1041 = vpop.f32.mrf.mxu0
    %v1042 = vadd.f32 0.0, %v1041
    %1043 = vdwg.mxu0
    %v1044 = vadd.f32 %v1000, %v1033
    %v1045 = vadd.f32 %v1000, %v1036
    %v1046 = vadd.f32 %v1000, %v1039
    %v1047 = vadd.f32 %v1000, %v1042
    %s1048 = scalar_lea.vmem [#allocation2], 288
    %v1049 = vld [vmem:[%s1048] sm:$0xff]
    %v1050 = vld [vmem:[%s1048 + $0x8] sm:$0xff]
    %v1051 = vld [vmem:[%s1048 + $0x10] sm:$0xff]
    %v1052 = vld [vmem:[%s1048 + $0x18] sm:$0xff]
    %v1054 = vsel %vm48, %v861, 0
    %v1057 = vsel %vm48, %v862, 0
    %v1060 = vsel %vm48, %v863, 0
    %v1063 = vsel %vm48, %v864, 0
    %1065 = vmatpush.msra.mxu0 0.0
    %1066 = vmatpush.msra.mxu0 0.0
    %1067 = vmatpush.msra.mxu0 0.0
    %1068 = vmatpush.msra.mxu0 0.0
    %1069 = vmatpush.msra.mxu0 0.0
    %1070 = vmatpush.msra.mxu0 0.0
    %1071 = vmatpush.msra.mxu0 0.0
    %1072 = vmatpush.msra.mxu0 0.0
    %1073 = vmatpush.msra.mxu0 0.0
    %1074 = vmatpush.msra.mxu0 0.0
    %1075 = vmatpush.msra.mxu0 0.0
    %1076 = vmatpush.msra.mxu0 0.0
    %1077 = vmatpush.msra.mxu0 %v1052
    %1078 = vmatpush.msra.mxu0 %v1051
    %1079 = vmatpush.msra.mxu0 %v1050
    %1080 = vmatpush.msra.mxu0 %v1049
    %1081 = vmatmul.f32.gmra.mxu0 %v1054
    %v1082 = vpop.f32.mrf.mxu0
    %v1083 = vadd.f32 0.0, %v1082
    %1084 = vmatmul.f32.gmra.mxu0 %v1057
    %v1085 = vpop.f32.mrf.mxu0
    %v1086 = vadd.f32 0.0, %v1085
    %1087 = vmatmul.f32.gmra.mxu0 %v1060
    %v1088 = vpop.f32.mrf.mxu0
    %v1089 = vadd.f32 0.0, %v1088
    %1090 = vmatmul.f32.gmra.mxu0 %v1063
    %v1091 = vpop.f32.mrf.mxu0
    %v1092 = vadd.f32 0.0, %v1091
    %1093 = vdwg.mxu0
    %v1094 = vadd.f32 %v1044, %v1083
    %v1095 = vadd.f32 %v1045, %v1086
    %v1096 = vadd.f32 %v1046, %v1089
    %v1097 = vadd.f32 %v1047, %v1092
    %s1098 = scalar_lea.vmem [#allocation2], 128
    %v1099 = vld [vmem:[%s1098] sm:$0xff]
    %v1100 = vld [vmem:[%s1098 + $0x8] sm:$0xff]
    %v1101 = vld [vmem:[%s1098 + $0x10] sm:$0xff]
    %v1102 = vld [vmem:[%s1098 + $0x18] sm:$0xff]
    %v1104 = vsel %vm48, %v883, 0
    %v1107 = vsel %vm48, %v886, 0
    %v1110 = vsel %vm48, %v889, 0
    %v1113 = vsel %vm48, %v892, 0
    %1115 = vmatpush.msra.mxu0 0.0
    %1116 = vmatpush.msra.mxu0 0.0
    %1117 = vmatpush.msra.mxu0 0.0
    %1118 = vmatpush.msra.mxu0 0.0
    %1119 = vmatpush.msra.mxu0 0.0
    %1120 = vmatpush.msra.mxu0 0.0
    %1121 = vmatpush.msra.mxu0 0.0
    %1122 = vmatpush.msra.mxu0 0.0
    %1123 = vmatpush.msra.mxu0 0.0
    %1124 = vmatpush.msra.mxu0 0.0
    %1125 = vmatpush.msra.mxu0 0.0
    %1126 = vmatpush.msra.mxu0 0.0
    %1127 = vmatpush.msra.mxu0 %v1102
    %1128 = vmatpush.msra.mxu0 %v1101
    %1129 = vmatpush.msra.mxu0 %v1100
    %1130 = vmatpush.msra.mxu0 %v1099
    %1131 = vmatmul.f32.gmra.mxu0 %v1104
    %v1132 = vpop.f32.mrf.mxu0
    %v1133 = vadd.f32 0.0, %v1132
    %1134 = vmatmul.f32.gmra.mxu0 %v1107
    %v1135 = vpop.f32.mrf.mxu0
    %v1136 = vadd.f32 0.0, %v1135
    %1137 = vmatmul.f32.gmra.mxu0 %v1110
    %v1138 = vpop.f32.mrf.mxu0
    %v1139 = vadd.f32 0.0, %v1138
    %1140 = vmatmul.f32.gmra.mxu0 %v1113
    %v1141 = vpop.f32.mrf.mxu0
    %v1142 = vadd.f32 0.0, %v1141
    %1143 = vdwg.mxu0
    %v1144 = vadd.f32 %v1094, %v1133
    %v1145 = vadd.f32 %v1095, %v1136
    %v1146 = vadd.f32 %v1096, %v1139
    %v1147 = vadd.f32 %v1097, %v1142
    %s1148 = scalar_lea.vmem [#allocation2], 320
    %v1149 = vld [vmem:[%s1148] sm:$0xff]
    %v1150 = vld [vmem:[%s1148 + $0x8] sm:$0xff]
    %v1151 = vld [vmem:[%s1148 + $0x10] sm:$0xff]
    %v1152 = vld [vmem:[%s1148 + $0x18] sm:$0xff]
    %v1154 = vsel %vm48, %v949, 0
    %v1157 = vsel %vm48, %v952, 0
    %v1160 = vsel %vm48, %v955, 0
    %v1163 = vsel %vm48, %v958, 0
    %1165 = vmatpush.msra.mxu0 0.0
    %1166 = vmatpush.msra.mxu0 0.0
    %1167 = vmatpush.msra.mxu0 0.0
    %1168 = vmatpush.msra.mxu0 0.0
    %1169 = vmatpush.msra.mxu0 0.0
    %1170 = vmatpush.msra.mxu0 0.0
    %1171 = vmatpush.msra.mxu0 0.0
    %1172 = vmatpush.msra.mxu0 0.0
    %1173 = vmatpush.msra.mxu0 0.0
    %1174 = vmatpush.msra.mxu0 0.0
    %1175 = vmatpush.msra.mxu0 0.0
    %1176 = vmatpush.msra.mxu0 0.0
    %1177 = vmatpush.msra.mxu0 %v1152
    %1178 = vmatpush.msra.mxu0 %v1151
    %1179 = vmatpush.msra.mxu0 %v1150
    %1180 = vmatpush.msra.mxu0 %v1149
    %1181 = vmatmul.f32.gmra.mxu0 %v1154
    %v1182 = vpop.f32.mrf.mxu0
    %v1183 = vadd.f32 0.0, %v1182
    %1184 = vmatmul.f32.gmra.mxu0 %v1157
    %v1185 = vpop.f32.mrf.mxu0
    %v1186 = vadd.f32 0.0, %v1185
    %1187 = vmatmul.f32.gmra.mxu0 %v1160
    %v1188 = vpop.f32.mrf.mxu0
    %v1189 = vadd.f32 0.0, %v1188
    %1190 = vmatmul.f32.gmra.mxu0 %v1163
    %v1191 = vpop.f32.mrf.mxu0
    %v1192 = vadd.f32 0.0, %v1191
    %1193 = vdwg.mxu0
    %v1194 = vadd.f32 %v1144, %v1183
    %v1195 = vadd.f32 %v1145, %v1186
    %v1196 = vadd.f32 %v1146, %v1189
    %v1197 = vadd.f32 %v1147, %v1192
    %s1198 = scalar_lea.vmem [#allocation2], 160
    %v1199 = vld [vmem:[%s1198] sm:$0xff]
    %v1200 = vld [vmem:[%s1198 + $0x8] sm:$0xff]
    %v1201 = vld [vmem:[%s1198 + $0x10] sm:$0xff]
    %v1202 = vld [vmem:[%s1198 + $0x18] sm:$0xff]
    %v1204 = vsel %vm48, %v927, 0
    %v1207 = vsel %vm48, %v928, 0
    %v1210 = vsel %vm48, %v929, 0
    %v1213 = vsel %vm48, %v930, 0
    %1215 = vmatpush.msra.mxu0 0.0
    %1216 = vmatpush.msra.mxu0 0.0
    %1217 = vmatpush.msra.mxu0 0.0
    %1218 = vmatpush.msra.mxu0 0.0
    %1219 = vmatpush.msra.mxu0 0.0
    %1220 = vmatpush.msra.mxu0 0.0
    %1221 = vmatpush.msra.mxu0 0.0
    %1222 = vmatpush.msra.mxu0 0.0
    %1223 = vmatpush.msra.mxu0 0.0
    %1224 = vmatpush.msra.mxu0 0.0
    %1225 = vmatpush.msra.mxu0 0.0
    %1226 = vmatpush.msra.mxu0 0.0
    %1227 = vmatpush.msra.mxu0 %v1202
    %1228 = vmatpush.msra.mxu0 %v1201
    %1229 = vmatpush.msra.mxu0 %v1200
    %1230 = vmatpush.msra.mxu0 %v1199
    %1231 = vmatmul.f32.gmra.mxu0 %v1204
    %v1232 = vpop.f32.mrf.mxu0
    %v1233 = vadd.f32 0.0, %v1232
    %1234 = vmatmul.f32.gmra.mxu0 %v1207
    %v1235 = vpop.f32.mrf.mxu0
    %v1236 = vadd.f32 0.0, %v1235
    %1237 = vmatmul.f32.gmra.mxu0 %v1210
    %v1238 = vpop.f32.mrf.mxu0
    %v1239 = vadd.f32 0.0, %v1238
    %1240 = vmatmul.f32.gmra.mxu0 %v1213
    %v1241 = vpop.f32.mrf.mxu0
    %v1242 = vadd.f32 0.0, %v1241
    %1243 = vdwg.mxu0
    %v1244 = vadd.f32 %v1194, %v1233
    %v1245 = vadd.f32 %v1195, %v1236
    %v1246 = vadd.f32 %v1196, %v1239
    %v1247 = vadd.f32 %v1197, %v1242
    %s1248 = scalar_lea.vmem [#allocation2], 352
    %v1249 = vld [vmem:[%s1248] sm:$0xff]
    %v1250 = vld [vmem:[%s1248 + $0x8] sm:$0xff]
    %v1251 = vld [vmem:[%s1248 + $0x10] sm:$0xff]
    %v1252 = vld [vmem:[%s1248 + $0x18] sm:$0xff]
    %v1254 = vsel %vm48, %v993, 0
    %v1257 = vsel %vm48, %v994, 0
    %v1260 = vsel %vm48, %v995, 0
    %v1263 = vsel %vm48, %v996, 0
    %1265 = vmatpush.msra.mxu0 0.0
    %1266 = vmatpush.msra.mxu0 0.0
    %1267 = vmatpush.msra.mxu0 0.0
    %1268 = vmatpush.msra.mxu0 0.0
    %1269 = vmatpush.msra.mxu0 0.0
    %1270 = vmatpush.msra.mxu0 0.0
    %1271 = vmatpush.msra.mxu0 0.0
    %1272 = vmatpush.msra.mxu0 0.0
    %1273 = vmatpush.msra.mxu0 0.0
    %1274 = vmatpush.msra.mxu0 0.0
    %1275 = vmatpush.msra.mxu0 0.0
    %1276 = vmatpush.msra.mxu0 0.0
    %1277 = vmatpush.msra.mxu0 %v1252
    %1278 = vmatpush.msra.mxu0 %v1251
    %1279 = vmatpush.msra.mxu0 %v1250
    %1280 = vmatpush.msra.mxu0 %v1249
    %1281 = vmatmul.f32.gmra.mxu0 %v1254
    %v1282 = vpop.f32.mrf.mxu0
    %v1283 = vadd.f32 0.0, %v1282
    %1284 = vmatmul.f32.gmra.mxu0 %v1257
    %v1285 = vpop.f32.mrf.mxu0
    %v1286 = vadd.f32 0.0, %v1285
    %1287 = vmatmul.f32.gmra.mxu0 %v1260
    %v1288 = vpop.f32.mrf.mxu0
    %v1289 = vadd.f32 0.0, %v1288
    %1290 = vmatmul.f32.gmra.mxu0 %v1263
    %v1291 = vpop.f32.mrf.mxu0
    %v1292 = vadd.f32 0.0, %v1291
    %1293 = vdwg.mxu0
    %v1294 = vadd.f32 %v1244, %v1283
    %v1295 = vadd.f32 %v1245, %v1286
    %v1296 = vadd.f32 %v1246, %v1289
    %v1297 = vadd.f32 %v1247, %v1292
    %v1298 = vxor.u32 %v1294, 2147483648
    %v1299 = vxor.u32 %v1295, 2147483648
    %v1300 = vxor.u32 %v1296, 2147483648
    %v1301 = vxor.u32 %v1297, 2147483648
    %v1302 = vmul.f32 %v1298, 1.442695
    %v1303 = vpow.pop %v1302
    %v1304 = vmul.f32 %v1299, 1.442695
    %v1305 = vpow.pop %v1304
    %v1306 = vmul.f32 %v1300, 1.442695
    %v1307 = vpow.pop %v1306
    %v1308 = vmul.f32 %v1301, 1.442695
    %v1309 = vpow.pop %v1308
    %v1310 = vadd.f32 %v1303, 1.0
    %v1311 = vadd.f32 %v1305, 1.0
    %v1312 = vadd.f32 %v1307, 1.0
    %v1313 = vadd.f32 %v1309, 1.0
    %v1314 = vrcp.pop %v1310
    %v1315 = vmul.f32 %v1310, %v1314
    %v1316 = vsub.f32 1.0, %v1315
    %v1317 = vmul.f32 %v1314, %v1316
    %v1318 = vadd.f32 %v1314, %v1317
    %vm1319 = vweird.f32 %v1310
    %vm1320 = vweird.f32 %v1314
    %vm1321 = vmor %vm1319, %vm1320
    %v1322 = vsel %vm1321, %v1314, %v1318
    %v1323 = vand.u32 2147483647, %v1310
    %vm1324 = vcmp.eq.f32.partialorder %v1323, 8.507059e+37
    %v1325 = vand.u32 %v1310, 2147483648
    %v1326 = vor.u32 1.1754944e-38, %v1325
    %v1327 = vsel %vm1324, %v1326, %v1322
    %v1328 = vmul.f32 1.0, %v1327
    %v1329 = vrcp.pop %v1311
    %v1330 = vmul.f32 %v1311, %v1329
    %v1331 = vsub.f32 1.0, %v1330
    %v1332 = vmul.f32 %v1329, %v1331
    %v1333 = vadd.f32 %v1329, %v1332
    %vm1334 = vweird.f32 %v1311
    %vm1335 = vweird.f32 %v1329
    %vm1336 = vmor %vm1334, %vm1335
    %v1337 = vsel %vm1336, %v1329, %v1333
    %v1338 = vand.u32 2147483647, %v1311
    %vm1339 = vcmp.eq.f32.partialorder %v1338, 8.507059e+37
    %v1340 = vand.u32 %v1311, 2147483648
    %v1341 = vor.u32 1.1754944e-38, %v1340
    %v1342 = vsel %vm1339, %v1341, %v1337
    %v1343 = vmul.f32 1.0, %v1342
    %v1344 = vrcp.pop %v1312
    %v1345 = vmul.f32 %v1312, %v1344
    %v1346 = vsub.f32 1.0, %v1345
    %v1347 = vmul.f32 %v1344, %v1346
    %v1348 = vadd.f32 %v1344, %v1347
    %vm1349 = vweird.f32 %v1312
    %vm1350 = vweird.f32 %v1344
    %vm1351 = vmor %vm1349, %vm1350
    %v1352 = vsel %vm1351, %v1344, %v1348
    %v1353 = vand.u32 2147483647, %v1312
    %vm1354 = vcmp.eq.f32.partialorder %v1353, 8.507059e+37
    %v1355 = vand.u32 %v1312, 2147483648
    %v1356 = vor.u32 1.1754944e-38, %v1355
    %v1357 = vsel %vm1354, %v1356, %v1352
    %v1358 = vmul.f32 1.0, %v1357
    %v1359 = vrcp.pop %v1313
    %v1360 = vmul.f32 %v1313, %v1359
    %v1361 = vsub.f32 1.0, %v1360
    %v1362 = vmul.f32 %v1359, %v1361
    %v1363 = vadd.f32 %v1359, %v1362
    %vm1364 = vweird.f32 %v1313
    %vm1365 = vweird.f32 %v1359
    %vm1366 = vmor %vm1364, %vm1365
    %v1367 = vsel %vm1366, %v1359, %v1363
    %v1368 = vand.u32 2147483647, %v1313
    %vm1369 = vcmp.eq.f32.partialorder %v1368, 8.507059e+37
    %v1370 = vand.u32 %v1313, 2147483648
    %v1371 = vor.u32 1.1754944e-38, %v1370
    %v1372 = vsel %vm1369, %v1371, %v1367
    %v1373 = vmul.f32 1.0, %v1372
    %v1374 = vmul.f32 %v1328, %v861
    %v1375 = vmul.f32 %v1343, %v862
    %v1376 = vmul.f32 %v1358, %v863
    %v1377 = vmul.f32 %v1373, %v864
    %1378 = vmatpush.msra.mxu0 0.0
    %1379 = vmatpush.msra.mxu0 0.0
    %1380 = vmatpush.msra.mxu0 0.0
    %1381 = vmatpush.msra.mxu0 0.0
    %1382 = vmatpush.msra.mxu0 0.0
    %1383 = vmatpush.msra.mxu0 0.0
    %1384 = vmatpush.msra.mxu0 0.0
    %1385 = vmatpush.msra.mxu0 0.0
    %1386 = vmatpush.msra.mxu0 0.0
    %1387 = vmatpush.msra.mxu0 0.0
    %1388 = vmatpush.msra.mxu0 0.0
    %1389 = vmatpush.msra.mxu0 0.0
    %1390 = vmatpush.msra.mxu0 %v1377
    %1391 = vmatpush.msra.mxu0 %v1376
    %1392 = vmatpush.msra.mxu0 %v1375
    %1393 = vmatpush.msra.mxu0 %v1374
    %1394 = vmatmul.f32.gmra.mxu0 %v50
    %v1395 = vpop.f32.mrf.mxu0
    %v1396 = vadd.f32 0.0, %v1395
    %1397 = vmatmul.f32.gmra.mxu0 %v53
    %v1398 = vpop.f32.mrf.mxu0
    %v1399 = vadd.f32 0.0, %v1398
    %1400 = vmatmul.f32.gmra.mxu0 %v56
    %v1401 = vpop.f32.mrf.mxu0
    %v1402 = vadd.f32 0.0, %v1401
    %1403 = vmatmul.f32.gmra.mxu0 %v59
    %v1404 = vpop.f32.mrf.mxu0
    %v1405 = vadd.f32 0.0, %v1404
    %1406 = vdwg.mxu0
    %1407 = vmatpush.msra.mxu0 0.0
    %1408 = vmatpush.msra.mxu0 0.0
    %1409 = vmatpush.msra.mxu0 0.0
    %1410 = vmatpush.msra.mxu0 0.0
    %1411 = vmatpush.msra.mxu0 0.0
    %1412 = vmatpush.msra.mxu0 0.0
    %1413 = vmatpush.msra.mxu0 0.0
    %1414 = vmatpush.msra.mxu0 0.0
    %1415 = vmatpush.msra.mxu0 0.0
    %1416 = vmatpush.msra.mxu0 0.0
    %1417 = vmatpush.msra.mxu0 0.0
    %1418 = vmatpush.msra.mxu0 0.0
    %1419 = vmatpush.msra.mxu0 %v1405
    %1420 = vmatpush.msra.mxu0 %v1402
    %1421 = vmatpush.msra.mxu0 %v1399
    %1422 = vmatpush.msra.mxu0 %v1396
    %1423 = vmatmul.f32.gmra.mxu0 %v50
    %v1424 = vpop.f32.mrf.mxu0
    %v1425 = vadd.f32 0.0, %v1424
    %1426 = vmatmul.f32.gmra.mxu0 %v53
    %v1427 = vpop.f32.mrf.mxu0
    %v1428 = vadd.f32 0.0, %v1427
    %1429 = vmatmul.f32.gmra.mxu0 %v56
    %v1430 = vpop.f32.mrf.mxu0
    %v1431 = vadd.f32 0.0, %v1430
    %1432 = vmatmul.f32.gmra.mxu0 %v59
    %v1433 = vpop.f32.mrf.mxu0
    %v1434 = vadd.f32 0.0, %v1433
    %1435 = vdwg.mxu0
    %v1436 = vmul.f32 %v1425, 2.0
    %v1437 = vmul.f32 %v1428, 2.0
    %v1438 = vmul.f32 %v1431, 2.0
    %v1439 = vmul.f32 %v1434, 2.0
    %v1440 = vsub.f32 %v1436, %v1374
    %v1441 = vsub.f32 %v1437, %v1375
    %v1442 = vsub.f32 %v1438, %v1376
    %v1443 = vsub.f32 %v1439, %v1377
    %s1444 = scalar_lea.vmem [#allocation2], 480
    %v1445 = vld [vmem:[%s1444] sm:$0xff]
    %v1446 = vld [vmem:[%s1444 + $0x8] sm:$0xff]
    %v1447 = vld [vmem:[%s1444 + $0x10] sm:$0xff]
    %v1448 = vld [vmem:[%s1444 + $0x18] sm:$0xff]
    %v1450 = vsel %vm48, %v1374, 0
    %v1453 = vsel %vm48, %v1375, 0
    %v1456 = vsel %vm48, %v1376, 0
    %v1459 = vsel %vm48, %v1377, 0
    %1461 = vmatpush.msra.mxu0 0.0
    %1462 = vmatpush.msra.mxu0 0.0
    %1463 = vmatpush.msra.mxu0 0.0
    %1464 = vmatpush.msra.mxu0 0.0
    %1465 = vmatpush.msra.mxu0 0.0
    %1466 = vmatpush.msra.mxu0 0.0
    %1467 = vmatpush.msra.mxu0 0.0
    %1468 = vmatpush.msra.mxu0 0.0
    %1469 = vmatpush.msra.mxu0 0.0
    %1470 = vmatpush.msra.mxu0 0.0
    %1471 = vmatpush.msra.mxu0 0.0
    %1472 = vmatpush.msra.mxu0 0.0
    %1473 = vmatpush.msra.mxu0 %v1448
    %1474 = vmatpush.msra.mxu0 %v1447
    %1475 = vmatpush.msra.mxu0 %v1446
    %1476 = vmatpush.msra.mxu0 %v1445
    %1477 = vmatmul.f32.gmra.mxu0 %v1450
    %v1478 = vpop.f32.mrf.mxu0
    %v1479 = vadd.f32 0.0, %v1478
    %1480 = vmatmul.f32.gmra.mxu0 %v1453
    %v1481 = vpop.f32.mrf.mxu0
    %v1482 = vadd.f32 0.0, %v1481
    %1483 = vmatmul.f32.gmra.mxu0 %v1456
    %v1484 = vpop.f32.mrf.mxu0
    %v1485 = vadd.f32 0.0, %v1484
    %1486 = vmatmul.f32.gmra.mxu0 %v1459
    %v1487 = vpop.f32.mrf.mxu0
    %v1488 = vadd.f32 0.0, %v1487
    %1489 = vdwg.mxu0
    %v1490 = vadd.f32 %v1294, %v1479
    %v1491 = vadd.f32 %v1295, %v1482
    %v1492 = vadd.f32 %v1296, %v1485
    %v1493 = vadd.f32 %v1297, %v1488
    %s1494 = scalar_lea.vmem [#allocation2], 512
    %v1495 = vld [vmem:[%s1494] sm:$0xff]
    %v1496 = vld [vmem:[%s1494 + $0x8] sm:$0xff]
    %v1497 = vld [vmem:[%s1494 + $0x10] sm:$0xff]
    %v1498 = vld [vmem:[%s1494 + $0x18] sm:$0xff]
    %v1500 = vsel %vm48, %v1396, 0
    %v1503 = vsel %vm48, %v1399, 0
    %v1506 = vsel %vm48, %v1402, 0
    %v1509 = vsel %vm48, %v1405, 0
    %1511 = vmatpush.msra.mxu0 0.0
    %1512 = vmatpush.msra.mxu0 0.0
    %1513 = vmatpush.msra.mxu0 0.0
    %1514 = vmatpush.msra.mxu0 0.0
    %1515 = vmatpush.msra.mxu0 0.0
    %1516 = vmatpush.msra.mxu0 0.0
    %1517 = vmatpush.msra.mxu0 0.0
    %1518 = vmatpush.msra.mxu0 0.0
    %1519 = vmatpush.msra.mxu0 0.0
    %1520 = vmatpush.msra.mxu0 0.0
    %1521 = vmatpush.msra.mxu0 0.0
    %1522 = vmatpush.msra.mxu0 0.0
    %1523 = vmatpush.msra.mxu0 %v1498
    %1524 = vmatpush.msra.mxu0 %v1497
    %1525 = vmatpush.msra.mxu0 %v1496
    %1526 = vmatpush.msra.mxu0 %v1495
    %1527 = vmatmul.f32.gmra.mxu0 %v1500
    %v1528 = vpop.f32.mrf.mxu0
    %v1529 = vadd.f32 0.0, %v1528
    %1530 = vmatmul.f32.gmra.mxu0 %v1503
    %v1531 = vpop.f32.mrf.mxu0
    %v1532 = vadd.f32 0.0, %v1531
    %1533 = vmatmul.f32.gmra.mxu0 %v1506
    %v1534 = vpop.f32.mrf.mxu0
    %v1535 = vadd.f32 0.0, %v1534
    %1536 = vmatmul.f32.gmra.mxu0 %v1509
    %v1537 = vpop.f32.mrf.mxu0
    %v1538 = vadd.f32 0.0, %v1537
    %1539 = vdwg.mxu0
    %v1540 = vadd.f32 %v1490, %v1529
    %v1541 = vadd.f32 %v1491, %v1532
    %v1542 = vadd.f32 %v1492, %v1535
    %v1543 = vadd.f32 %v1493, %v1538
    %s1544 = scalar_lea.vmem [#allocation2], 544
    %v1545 = vld [vmem:[%s1544] sm:$0xff]
    %v1546 = vld [vmem:[%s1544 + $0x8] sm:$0xff]
    %v1547 = vld [vmem:[%s1544 + $0x10] sm:$0xff]
    %v1548 = vld [vmem:[%s1544 + $0x18] sm:$0xff]
    %v1550 = vsel %vm48, %v1440, 0
    %v1553 = vsel %vm48, %v1441, 0
    %v1556 = vsel %vm48, %v1442, 0
    %v1559 = vsel %vm48, %v1443, 0
    %1561 = vmatpush.msra.mxu0 0.0
    %1562 = vmatpush.msra.mxu0 0.0
    %1563 = vmatpush.msra.mxu0 0.0
    %1564 = vmatpush.msra.mxu0 0.0
    %1565 = vmatpush.msra.mxu0 0.0
    %1566 = vmatpush.msra.mxu0 0.0
    %1567 = vmatpush.msra.mxu0 0.0
    %1568 = vmatpush.msra.mxu0 0.0
    %1569 = vmatpush.msra.mxu0 0.0
    %1570 = vmatpush.msra.mxu0 0.0
    %1571 = vmatpush.msra.mxu0 0.0
    %1572 = vmatpush.msra.mxu0 0.0
    %1573 = vmatpush.msra.mxu0 %v1548
    %1574 = vmatpush.msra.mxu0 %v1547
    %1575 = vmatpush.msra.mxu0 %v1546
    %1576 = vmatpush.msra.mxu0 %v1545
    %1577 = vmatmul.f32.gmra.mxu0 %v1550
    %v1578 = vpop.f32.mrf.mxu0
    %v1579 = vadd.f32 0.0, %v1578
    %1580 = vmatmul.f32.gmra.mxu0 %v1553
    %v1581 = vpop.f32.mrf.mxu0
    %v1582 = vadd.f32 0.0, %v1581
    %1583 = vmatmul.f32.gmra.mxu0 %v1556
    %v1584 = vpop.f32.mrf.mxu0
    %v1585 = vadd.f32 0.0, %v1584
    %1586 = vmatmul.f32.gmra.mxu0 %v1559
    %v1587 = vpop.f32.mrf.mxu0
    %v1588 = vadd.f32 0.0, %v1587
    %1589 = vdwg.mxu0
    %v1590 = vadd.f32 %v1540, %v1579
    %v1591 = vadd.f32 %v1541, %v1582
    %v1592 = vadd.f32 %v1542, %v1585
    %v1593 = vadd.f32 %v1543, %v1588
    %v1594 = vtanh.pop %v1590
    %v1595 = vtanh.pop %v1591
    %v1596 = vtanh.pop %v1592
    %v1597 = vtanh.pop %v1593
    %1598 = vrot.lane.b32.xlu0 %v861, 32
    %v1599 = vpop.permute.xlu0 %1598
    %1600 = vrot.lane.b32.xlu0 %v862, 32
    %v1601 = vpop.permute.xlu0 %1600
    %1602 = vrot.lane.b32.xlu0 %v863, 32
    %v1603 = vpop.permute.xlu0 %1602
    %1604 = vrot.lane.b32.xlu0 %v864, 32
    %v1605 = vpop.permute.xlu0 %1604
    %v1610 = vmul.f32 %v1328, %v1599
    %v1611 = vmul.f32 %v1343, %v1601
    %v1612 = vmul.f32 %v1358, %v1603
    %v1613 = vmul.f32 %v1373, %v1605
    %v1614 = vsub.f32 1.0, %v1328
    %v1615 = vsub.f32 1.0, %v1343
    %v1616 = vsub.f32 1.0, %v1358
    %v1617 = vsub.f32 1.0, %v1373
    %1622 = vrot.lane.b32.xlu0 %v1594, 96
    %v1623 = vpop.permute.xlu0 %1622
    %1624 = vrot.lane.b32.xlu0 %v1595, 96
    %v1625 = vpop.permute.xlu0 %1624
    %1626 = vrot.lane.b32.xlu0 %v1596, 96
    %v1627 = vpop.permute.xlu0 %1626
    %1628 = vrot.lane.b32.xlu0 %v1597, 96
    %v1629 = vpop.permute.xlu0 %1628
    %v1634 = vmul.f32 %v1614, %v1623
    %v1635 = vmul.f32 %v1615, %v1625
    %v1636 = vmul.f32 %v1616, %v1627
    %v1637 = vmul.f32 %v1617, %v1629
    %v1638 = vadd.f32 %v1610, %v1634
    %v1639 = vadd.f32 %v1611, %v1635
    %v1640 = vadd.f32 %v1612, %v1636
    %v1641 = vadd.f32 %v1613, %v1637
    %1646 = vrot.lane.b32.xlu0 %v1638, 96
    %v1647 = vpop.permute.xlu0 %1646
    %1648 = vrot.lane.b32.xlu0 %v1639, 96
    %v1649 = vpop.permute.xlu0 %1648
    %1650 = vrot.lane.b32.xlu0 %v1640, 96
    %v1651 = vpop.permute.xlu0 %1650
    %1652 = vrot.lane.b32.xlu0 %v1641, 96
    %v1653 = vpop.permute.xlu0 %1652
    %s1658 = scalar_lea.vmem %s5, 32
    %1659 = vst.msk [vmem:[%s1658] sm:$0xff] %vm48, %v1647
    %1660 = vst.msk [vmem:[%s1658 + $0x8] sm:$0xff] %vm48, %v1649
    %1661 = vst.msk [vmem:[%s1658 + $0x10] sm:$0xff] %vm48, %v1651
    %1662 = vst.msk [vmem:[%s1658 + $0x18] sm:$0xff] %vm48, %v1653
    // Predicated region
    $region26: #{encoder_forward.1} parent=1 // pred_check
      _
    $region27: #{encoder_forward.1} parent=1 // pred_check_branch
      %1664 = sbr.rel (0) target = $region29
    $region28: #{encoder_forward.1} parent=1 // pred_region
      _
    $region29: #{encoder_forward.1} parent=1 // pred_fallthru
      _
    // Predicated region
    $region30: #{encoder_forward.1} parent=1 // pred_check
      _
    $region31: #{encoder_forward.1} parent=1 // pred_check_branch
      %1666 = sbr.rel (0) target = $region33
    $region32: #{encoder_forward.1} parent=1 // pred_region
      _
    $region33: #{encoder_forward.1} parent=1 // pred_fallthru
      _
    %1667 = vsyncpa [#allocation3], 1

</llo_original>
